<compile_context>
chip_gen: v6e
topology: v6e:2x2x1
jax: 0.10.0
libtpu: 0.0.40
codegen_flags: <defaults>
</compile_context>

<pallas_src>
import functools

import jax
import jax.numpy as jnp
from jax import lax
from jax.experimental import pallas as pl
from jax.experimental.pallas import tpu as pltpu

EPS = 1e-6  # T5 layer_norm_epsilon


# ------------------------------ small helpers ------------------------------ #

def _vmem_limit_bytes():
    """~75% of physical VMEM (96 MiB on v5e/v6e, 48 MiB on v7x); safe fallback."""
    try:
        cap = pltpu.get_tpu_info().vmem_capacity_bytes
        return int(min(cap * 3 // 4, 100 * 1024 * 1024))
    except Exception:
        return 48 * 1024 * 1024


_WEIGHT_BUFFERING = "unset"   # lazily resolved to pl.Buffered(1) or None


def _weight_pipeline_mode():
    """Single-buffering mode for grid-invariant (weight) inputs, if supported."""
    global _WEIGHT_BUFFERING
    if isinstance(_WEIGHT_BUFFERING, str):
        try:
            mode = pl.Buffered(1)

            def _probe(x_ref, o_ref):
                o_ref[...] = x_ref[...]

            pl.pallas_call(
                _probe,
                out_shape=jax.ShapeDtypeStruct((8, 128), jnp.float32),
                grid=(2,),
                in_specs=[pl.BlockSpec((8, 128), lambda i: (0, 0),
                                       pipeline_mode=mode)],
                out_specs=pl.BlockSpec((8, 128), lambda i: (0, 0)),
            )(jnp.zeros((8, 128), jnp.float32)).block_until_ready()
            _WEIGHT_BUFFERING = mode
        except Exception:
            _WEIGHT_BUFFERING = None
    return _WEIGHT_BUFFERING


def _const_spec(block_shape):
    """BlockSpec for an input whose block index never changes across the grid."""
    rank = len(block_shape)
    index_map = lambda *_: (0,) * rank
    mode = _weight_pipeline_mode()
    if mode is not None:
        return pl.BlockSpec(block_shape, index_map, pipeline_mode=mode)
    return pl.BlockSpec(block_shape, index_map)


def _pick_tile(n, cap, align):
    """Largest multiple-of-`align` divisor of n that is <= cap, else n itself."""
    best = 0
    t = align
    while t <= min(n, cap):
        if n % t == 0:
            best = t
        t += align
    return best if best > 0 else n


def _scratch_dtype(compute_dtype, d_kv):
    """Use packed (bf16) scratch only when per-head sublane offsets stay
    tile-aligned for the packed layout (d_kv % 16 == 0 for bf16)."""
    packing = max(1, 4 // jnp.dtype(compute_dtype).itemsize)
    return compute_dtype if d_kv % (8 * packing) == 0 else jnp.float32


def _rmsnorm_f32(x, w):
    var = jnp.mean(x * x, axis=-1, keepdims=True)
    return (x * lax.rsqrt(var + EPS)) * w


# ------------------------------ Pallas kernels ----------------------------- #

def self_attn_kernel(x_ref, kc_ref, vc_ref, ln_ref, wqkv_ref, wo_ref,
                     o_ref, nk_ref, nv_ref, qkv_scr, ctx_scr,
                     *, n_heads, d_kv):
    """RMSNorm + T5 self-attention + residual, plus the K/V cache roll."""
    cdt = wqkv_ref.dtype
    S = x_ref.shape[1]
    C = nk_ref.shape[1]
    inner = n_heads * d_kv

    # ---- cache roll: new_cache = cat([cache, x], 1)[:, -C:] (raw inputs) ----
    if S >= C:
        tail = x_ref[:, S - C:, :]
        nk_ref[...] = tail.astype(nk_ref.dtype)
        nv_ref[...] = tail.astype(nv_ref.dtype)
    else:
        nk_ref[:, :C - S, :] = kc_ref[:, S:, :]
        nk_ref[:, C - S:, :] = x_ref[...].astype(nk_ref.dtype)
        nv_ref[:, :C - S, :] = vc_ref[:, S:, :]
        nv_ref[:, C - S:, :] = x_ref[...].astype(nv_ref.dtype)

    # ---- RMSNorm (f32) + fused QKV projection (K = D depth on the MXU) ----
    x = x_ref[0].astype(jnp.float32)                          # (S, D)
    n = _rmsnorm_f32(x, ln_ref[0].astype(jnp.float32))        # (S, D)
    # qkv_scr[r, s] = sum_d Wqkv[r, d] * n[s, d]  ->  q^T / k^T / v^T stacked
    qkv_scr[...] = lax.dot_general(
        wqkv_ref[...], n.astype(cdt), (((1,), (1,)), ((), ())),
        preferred_element_type=jnp.float32).astype(qkv_scr.dtype)

    # ---- per-head attention (T5: no 1/sqrt(d_kv) scale, zero bias, no mask) --
    def head_body(h, carry):
        qo = pl.multiple_of(h * d_kv, d_kv)
        ko = pl.multiple_of(inner + h * d_kv, d_kv)
        vo = pl.multiple_of(2 * inner + h * d_kv, d_kv)
        q_h = qkv_scr[pl.ds(qo, d_kv), :].astype(cdt)          # (d_kv, S)
        k_h = qkv_scr[pl.ds(ko, d_kv), :].astype(cdt)          # (d_kv, S)
        v_h = qkv_scr[pl.ds(vo, d_kv), :].astype(cdt)          # (d_kv, S)
        s = lax.dot_general(q_h, k_h, (((0,), (0,)), ((), ())),
                            preferred_element_type=jnp.float32)   # (S, S)
        m = jnp.max(s, axis=-1, keepdims=True)
        p = jnp.exp(s - m)
        p = p * pl.reciprocal(jnp.sum(p, axis=-1, keepdims=True), approx=True)
        ctx_scr[pl.ds(qo, d_kv), :] = lax.dot_general(
            v_h, p.astype(cdt), (((1,), (1,)), ((), ())),
            preferred_element_type=jnp.float32).astype(ctx_scr.dtype)
        return carry

    lax.fori_loop(0, n_heads, head_body, 0)

    # ---- output projection + residual ----
    out = lax.dot_general(ctx_scr[...].astype(cdt), wo_ref[...],
                          (((0,), (0,)), ((), ())),
                          preferred_element_type=jnp.float32)      # (S, D)
    o_ref[0] = (out + x).astype(o_ref.dtype)


def cross_attn_kernel(x_ref, enc_ref, ln_ref, wq_ref, wkv_ref, wo_ref,
                      o_ref, q_scr, kv_scr, ctx_scr, *, n_heads, d_kv):
    """RMSNorm + T5 cross-attention over encoder states + residual."""
    cdt = wq_ref.dtype
    inner = n_heads * d_kv

    x = x_ref[0].astype(jnp.float32)                           # (S, D)
    n = _rmsnorm_f32(x, ln_ref[0].astype(jnp.float32))
    q_scr[...] = lax.dot_general(
        wq_ref[...], n.astype(cdt), (((1,), (1,)), ((), ())),
        preferred_element_type=jnp.float32).astype(q_scr.dtype)        # (inner, S)
    kv_scr[...] = lax.dot_general(
        wkv_ref[...], enc_ref[0].astype(cdt), (((1,), (1,)), ((), ())),
        preferred_element_type=jnp.float32).astype(kv_scr.dtype)       # (2*inner, L)

    def head_body(h, carry):
        qo = pl.multiple_of(h * d_kv, d_kv)
        vo = pl.multiple_of(inner + h * d_kv, d_kv)
        q_h = q_scr[pl.ds(qo, d_kv), :].astype(cdt)             # (d_kv, S)
        k_h = kv_scr[pl.ds(qo, d_kv), :].astype(cdt)            # (d_kv, L)
        v_h = kv_scr[pl.ds(vo, d_kv), :].astype(cdt)            # (d_kv, L)
        s = lax.dot_general(q_h, k_h, (((0,), (0,)), ((), ())),
                            preferred_element_type=jnp.float32)    # (S, L)
        m = jnp.max(s, axis=-1, keepdims=True)
        p = jnp.exp(s - m)
        p = p * pl.reciprocal(jnp.sum(p, axis=-1, keepdims=True), approx=True)
        ctx_scr[pl.ds(qo, d_kv), :] = lax.dot_general(
            v_h, p.astype(cdt), (((1,), (1,)), ((), ())),
            preferred_element_type=jnp.float32).astype(ctx_scr.dtype)
        return carry

    lax.fori_loop(0, n_heads, head_body, 0)

    out = lax.dot_general(ctx_scr[...].astype(cdt), wo_ref[...],
                          (((0,), (0,)), ((), ())),
                          preferred_element_type=jnp.float32)       # (S, D)
    o_ref[0] = (out + x).astype(o_ref.dtype)


def ffn_kernel(x_ref, ln_ref, wi_ref, wo_ref, o_ref, n_scr, acc_scr):
    """RMSNorm + Wi + ReLU + Wo + residual, reduced over a d_ff grid axis."""
    k = pl.program_id(1)

    @pl.when(k == 0)
    def _():
        x = x_ref[...].astype(jnp.float32)
        n_scr[...] = _rmsnorm_f32(x, ln_ref[0].astype(jnp.float32)).astype(
            n_scr.dtype)
        acc_scr[...] = jnp.zeros_like(acc_scr)

    h = jnp.dot(n_scr[...], wi_ref[...],
                preferred_element_type=jnp.float32)            # (tm, tf)
    h = jnp.maximum(h, 0.0).astype(wo_ref.dtype)               # T5DenseActDense ReLU
    acc_scr[...] += jnp.dot(h, wo_ref[...],
                            preferred_element_type=jnp.float32)  # (tm, D)

    @pl.when(k == pl.num_programs(1) - 1)
    def _():
        o_ref[...] = (acc_scr[...] + x_ref[...].astype(jnp.float32)).astype(
            o_ref.dtype)


# ------------------------------ Pallas wrappers ----------------------------- #

def self_attn_sublayer(x, key_cache, value_cache, ln_w, wqkv_t, wo,
                       n_heads, d_kv):
    B, S, D = x.shape
    C = key_cache.shape[1]
    inner = n_heads * d_kv
    cdt = wqkv_t.dtype
    scr_dt = _scratch_dtype(cdt, d_kv)
    kernel = functools.partial(self_attn_kernel, n_heads=n_heads, d_kv=d_kv)
    return pl.pallas_call(
        kernel,
        out_shape=(jax.ShapeDtypeStruct((B, S, D), x.dtype),
                   jax.ShapeDtypeStruct((B, C, D), key_cache.dtype),
                   jax.ShapeDtypeStruct((B, C, D), value_cache.dtype)),
        grid=(B,),
        in_specs=[
            pl.BlockSpec((1, S, D), lambda b: (b, 0, 0)),
            pl.BlockSpec((1, C, D), lambda b: (b, 0, 0)),
            pl.BlockSpec((1, C, D), lambda b: (b, 0, 0)),
            _const_spec((1, D)),
            _const_spec((3 * inner, D)),
            _const_spec((inner, D)),
        ],
        out_specs=(pl.BlockSpec((1, S, D), lambda b: (b, 0, 0)),
                   pl.BlockSpec((1, C, D), lambda b: (b, 0, 0)),
                   pl.BlockSpec((1, C, D), lambda b: (b, 0, 0))),
        scratch_shapes=[pltpu.VMEM((3 * inner, S), scr_dt),
                        pltpu.VMEM((inner, S), scr_dt)],
        compiler_params=pltpu.CompilerParams(
            dimension_semantics=("parallel",),
            vmem_limit_bytes=_vmem_limit_bytes()),
    )(x, key_cache, value_cache, ln_w.reshape(1, -1), wqkv_t, wo)


def cross_attn_sublayer(x, enc, ln_w, wq_t, wkv_t, wo, n_heads, d_kv):
    B, S, D = x.shape
    L = enc.shape[1]
    inner = n_heads * d_kv
    cdt = wq_t.dtype
    scr_dt = _scratch_dtype(cdt, d_kv)
    kernel = functools.partial(cross_attn_kernel, n_heads=n_heads, d_kv=d_kv)
    return pl.pallas_call(
        kernel,
        out_shape=jax.ShapeDtypeStruct((B, S, D), x.dtype),
        grid=(B,),
        in_specs=[
            pl.BlockSpec((1, S, D), lambda b: (b, 0, 0)),
            pl.BlockSpec((1, L, D), lambda b: (b, 0, 0)),
            _const_spec((1, D)),
            _const_spec((inner, D)),
            _const_spec((2 * inner, D)),
            _const_spec((inner, D)),
        ],
        out_specs=pl.BlockSpec((1, S, D), lambda b: (b, 0, 0)),
        scratch_shapes=[pltpu.VMEM((inner, S), scr_dt),
                        pltpu.VMEM((2 * inner, L), scr_dt),
                        pltpu.VMEM((inner, S), scr_dt)],
        compiler_params=pltpu.CompilerParams(
            dimension_semantics=("parallel",),
            vmem_limit_bytes=_vmem_limit_bytes()),
    )(x, enc, ln_w.reshape(1, -1), wq_t, wkv_t, wo)


def ffn_sublayer(x, ln_w, wi, wo):
    B, S, D = x.shape
    d_ff = wi.shape[1]
    M = B * S
    x2 = x.reshape(M, D)
    cdt = wi.dtype
    tm = _pick_tile(M, 512, 8)        # largest multiple-of-8 row tile <= 512
    tf = _pick_tile(d_ff, 1024, 128)  # d_ff reduction tile (lane-aligned)
    out = pl.pallas_call(
        ffn_kernel,
        out_shape=jax.ShapeDtypeStruct((M, D), x.dtype),
        grid=(M // tm, d_ff // tf),
        in_specs=[
            pl.BlockSpec((tm, D), lambda i, k: (i, 0)),
            _const_spec((1, D)),
            pl.BlockSpec((D, tf), lambda i, k: (0, k)),
            pl.BlockSpec((tf, D), lambda i, k: (k, 0)),
        ],
        out_specs=pl.BlockSpec((tm, D), lambda i, k: (i, 0)),
        scratch_shapes=[pltpu.VMEM((tm, D), cdt),
                        pltpu.VMEM((tm, D), jnp.float32)],
        compiler_params=pltpu.CompilerParams(
            dimension_semantics=("parallel", "arbitrary"),
            vmem_limit_bytes=_vmem_limit_bytes()),
    )(x2, ln_w.reshape(1, -1), wi, wo)
    return out.reshape(B, S, D)


# -------------------------------- model glue -------------------------------- #

def t5_decoder_block(x, enc, key_cache, value_cache, params, n_heads, d_kv):
    # h1 = x + SelfAttn(RMSNorm(x));  caches rolled from the raw input x.
    h1, new_k, new_v = self_attn_sublayer(
        x, key_cache, value_cache, params["ln1"], params["self_wqkv_t"],
        params["self_wo"], n_heads, d_kv)
    # h2 = h1 + CrossAttn(RMSNorm(h1), encoder_hidden_states)
    h2 = cross_attn_sublayer(h1, enc, params["ln2"], params["cross_wq_t"],
                             params["cross_wkv_t"], params["cross_wo"],
                             n_heads, d_kv)
    # out = h2 + Wo @ relu(Wi @ RMSNorm(h2))
    out = ffn_sublayer(h2, params["ln3"], params["ffn_wi"], params["ffn_wo"])
    return out, new_k, new_v


def custom_layer_forward(x, encoder_hidden_states, key_cache, value_cache,
                         params, n_heads, d_kv):
    """Functional equivalent of CustomT5DecoderLayerWithSegment.forward.
    The wrapped HF T5 block ignores the extra *_cache kwargs; the caches are
    simply rolled with the raw decoder input (last cache_len rows)."""
    return t5_decoder_block(x, encoder_hidden_states, key_cache, value_cache,
                            params, n_heads, d_kv)


# ------------------------------ params / main ------------------------------- #

def init_params(key, d_model, d_kv, n_heads, d_ff, dtype=jnp.bfloat16):
    """Weight layouts:
      self_wqkv_t : (3*inner, D) = cat([Wq, Wk, Wv], 0)   (PyTorch (out,in))
      *_wo        : (inner, D)   = o.weight.T
      cross_wq_t  : (inner, D),  cross_wkv_t: (2*inner, D) = cat([Wk, Wv], 0)
      ffn_wi      : (D, d_ff)    = wi.weight.T,  ffn_wo: (d_ff, D) = wo.weight.T
    """
    inner = n_heads * d_kv
    ks = jax.random.split(key, 10)
    s = 0.05

    def w(k, shape):
        return (jax.random.normal(k, shape, jnp.float32) * s).astype(dtype)

    return {
        "ln1": jnp.ones((d_model,), jnp.float32),
        "ln2": jnp.ones((d_model,), jnp.float32),
        "ln3": jnp.ones((d_model,), jnp.float32),
        "self_wqkv_t": jnp.concatenate([w(ks[0], (inner, d_model)),
                                        w(ks[1], (inner, d_model)),
                                        w(ks[2], (inner, d_model))], axis=0),
        "self_wo": w(ks[3], (inner, d_model)),
        "cross_wq_t": w(ks[4], (inner, d_model)),
        "cross_wkv_t": jnp.concatenate([w(ks[5], (inner, d_model)),
                                        w(ks[6], (inner, d_model))], axis=0),
        "cross_wo": w(ks[7], (inner, d_model)),
        "ffn_wi": w(ks[8], (d_model, d_ff)),
        "ffn_wo": w(ks[9], (d_ff, d_model)),
    }


if __name__ == "__main__":
    B, S, D = 2, 8, 32          # batch, segment(+memory) length, d_model
    N_HEADS, D_KV, D_FF = 4, 16, 64
    ENC_LEN = 8
    CACHE_LEN = 16
    DTYPE = jnp.bfloat16        # bf16 inference path (MXU-native)

    root = jax.random.PRNGKey(0)
    k_x, k_enc, k_p = jax.random.split(root, 3)

    x = jax.random.normal(k_x, (B, S, D), jnp.float32).astype(DTYPE)
    enc = jax.random.normal(k_enc, (B, ENC_LEN, D), jnp.float32).astype(DTYPE)
    # first call: caches are freshly-initialized zeros (input.new_zeros(...))
    key_cache = jnp.zeros((B, CACHE_LEN, D), DTYPE)
    value_cache = jnp.zeros((B, CACHE_LEN, D), DTYPE)

    params = init_params(k_p, D, D_KV, N_HEADS, D_FF, DTYPE)

    out, new_k, new_v = custom_layer_forward(
        x, enc, key_cache, value_cache, params, N_HEADS, D_KV)

    jax.block_until_ready((out, new_k, new_v))
    assert out.shape == (B, S, D)
    assert new_k.shape == (B, CACHE_LEN, D) and new_v.shape == (B, CACHE_LEN, D)
    assert bool(jnp.all(jnp.isfinite(out.astype(jnp.float32))))
    print("KERNEL_OK")
</pallas_src>

<mosaic_0001>
module attributes {stable_mosaic.version = 11 : i64} {
  func.func @_probe(%arg0: i32, %arg1: memref<8x128xf32, #tpu.memory_space<vmem>>, %arg2: memref<8x128xf32, #tpu.memory_space<vmem>>) attributes {dimension_semantics = [#tpu.dimension_semantics<arbitrary>], iteration_bounds = array<i64: 2>, scalar_prefetch = 0 : i64, scratch_operands = 0 : i64, tpu.core_type = #tpu.core_type<tc>, window_params = [{pipeline_mode = #tpu.pipeline_mode<synchronous>, transform_indices = @transform_0, window_bounds = array<i64: 8, 128>}, {pipeline_mode = #tpu.pipeline_mode<synchronous>, transform_indices = @transform_1, window_bounds = array<i64: 8, 128>}]} {
    %c0 = arith.constant 0 : index
    %c0_0 = arith.constant 0 : index
    %0 = vector.load %arg1[%c0, %c0_0] : memref<8x128xf32, #tpu.memory_space<vmem>>, vector<8x128xf32>
    %c0_1 = arith.constant 0 : index
    %c0_2 = arith.constant 0 : index
    %1 = vector.load %arg2[%c0_1, %c0_2] : memref<8x128xf32, #tpu.memory_space<vmem>>, vector<8x128xf32>
    tpu.vector_store %arg2[%c0_1, %c0_2], %0 {strides = array<i32>} : memref<8x128xf32, #tpu.memory_space<vmem>>, vector<8x128xf32>,
    return
  }
  func.func @transform_0(%arg0: i32) -> (i32, i32) {
    %c0_i32 = arith.constant 0 : i32
    %c0_i32_0 = arith.constant 0 : i32
    %c0_i32_1 = arith.constant 0 : i32
    return %c0_i32, %c0_i32_0 : i32, i32
  }
  func.func @transform_1(%arg0: i32) -> (i32, i32) {
    %c0_i32 = arith.constant 0 : i32
    %c0_i32_0 = arith.constant 0 : i32
    %c0_i32_1 = arith.constant 0 : i32
    return %c0_i32, %c0_i32_0 : i32, i32
  }
}

module attributes {stable_mosaic.version = 11 : i64} {
  func.func @self_attn_kernel(%arg0: i32, %arg1: memref<1x8x32xbf16, #tpu.memory_space<vmem>>, %arg2: memref<1x16x32xbf16, #tpu.memory_space<vmem>>, %arg3: memref<1x16x32xbf16, #tpu.memory_space<vmem>>, %arg4: memref<1x32xf32, #tpu.memory_space<vmem>>, %arg5: memref<192x32xbf16, #tpu.memory_space<vmem>>, %arg6: memref<64x32xbf16, #tpu.memory_space<vmem>>, %arg7: memref<1x8x32xbf16, #tpu.memory_space<vmem>>, %arg8: memref<1x16x32xbf16, #tpu.memory_space<vmem>>, %arg9: memref<1x16x32xbf16, #tpu.memory_space<vmem>>, %arg10: memref<192x8xbf16, #tpu.memory_space<vmem>>, %arg11: memref<64x8xbf16, #tpu.memory_space<vmem>>) attributes {dimension_semantics = [#tpu.dimension_semantics<parallel>], iteration_bounds = array<i64: 2>, scalar_prefetch = 0 : i64, scratch_operands = 2 : i64, tpu.core_type = #tpu.core_type<tc>, window_params = [{transform_indices = @transform_0, window_bounds = array<i64: 1, 8, 32>}, {transform_indices = @transform_1, window_bounds = array<i64: 1, 16, 32>}, {transform_indices = @transform_2, window_bounds = array<i64: 1, 16, 32>}, {pipeline_mode = #tpu.pipeline_mode<synchronous>, transform_indices = @transform_3, window_bounds = array<i64: 1, 32>}, {pipeline_mode = #tpu.pipeline_mode<synchronous>, transform_indices = @transform_4, window_bounds = array<i64: 192, 32>}, {pipeline_mode = #tpu.pipeline_mode<synchronous>, transform_indices = @transform_5, window_bounds = array<i64: 64, 32>}, {transform_indices = @transform_6, window_bounds = array<i64: 1, 8, 32>}, {transform_indices = @transform_7, window_bounds = array<i64: 1, 16, 32>}, {transform_indices = @transform_8, window_bounds = array<i64: 1, 16, 32>}]} {
    %c0 = arith.constant 0 : index
    %c8 = arith.constant 8 : index
    %c0_0 = arith.constant 0 : index
    %0 = vector.load %arg2[%c0, %c8, %c0_0] : memref<1x16x32xbf16, #tpu.memory_space<vmem>>, vector<1x8x32xbf16>
    %c0_1 = arith.constant 0 : index
    %c0_2 = arith.constant 0 : index
    %c0_3 = arith.constant 0 : index
    %1 = vector.load %arg8[%c0_1, %c0_2, %c0_3] : memref<1x16x32xbf16, #tpu.memory_space<vmem>>, vector<1x8x32xbf16>
    tpu.vector_store %arg8[%c0_1, %c0_2, %c0_3], %0 {strides = array<i32>} : memref<1x16x32xbf16, #tpu.memory_space<vmem>>, vector<1x8x32xbf16>,
    %c0_4 = arith.constant 0 : index
    %c0_5 = arith.constant 0 : index
    %c0_6 = arith.constant 0 : index
    %2 = vector.load %arg1[%c0_4, %c0_5, %c0_6] : memref<1x8x32xbf16, #tpu.memory_space<vmem>>, vector<1x8x32xbf16>
    %c0_7 = arith.constant 0 : index
    %c8_8 = arith.constant 8 : index
    %c0_9 = arith.constant 0 : index
    %3 = vector.load %arg8[%c0_7, %c8_8, %c0_9] : memref<1x16x32xbf16, #tpu.memory_space<vmem>>, vector<1x8x32xbf16>
    tpu.vector_store %arg8[%c0_7, %c8_8, %c0_9], %2 {strides = array<i32>} : memref<1x16x32xbf16, #tpu.memory_space<vmem>>, vector<1x8x32xbf16>,
    %c0_10 = arith.constant 0 : index
    %c8_11 = arith.constant 8 : index
    %c0_12 = arith.constant 0 : index
    %4 = vector.load %arg3[%c0_10, %c8_11, %c0_12] : memref<1x16x32xbf16, #tpu.memory_space<vmem>>, vector<1x8x32xbf16>
    %c0_13 = arith.constant 0 : index
    %c0_14 = arith.constant 0 : index
    %c0_15 = arith.constant 0 : index
    %5 = vector.load %arg9[%c0_13, %c0_14, %c0_15] : memref<1x16x32xbf16, #tpu.memory_space<vmem>>, vector<1x8x32xbf16>
    tpu.vector_store %arg9[%c0_13, %c0_14, %c0_15], %4 {strides = array<i32>} : memref<1x16x32xbf16, #tpu.memory_space<vmem>>, vector<1x8x32xbf16>,
    %c0_16 = arith.constant 0 : index
    %c0_17 = arith.constant 0 : index
    %c0_18 = arith.constant 0 : index
    %6 = vector.load %arg1[%c0_16, %c0_17, %c0_18] : memref<1x8x32xbf16, #tpu.memory_space<vmem>>, vector<1x8x32xbf16>
    %c0_19 = arith.constant 0 : index
    %c8_20 = arith.constant 8 : index
    %c0_21 = arith.constant 0 : index
    %7 = vector.load %arg9[%c0_19, %c8_20, %c0_21] : memref<1x16x32xbf16, #tpu.memory_space<vmem>>, vector<1x8x32xbf16>
    tpu.vector_store %arg9[%c0_19, %c8_20, %c0_21], %6 {strides = array<i32>} : memref<1x16x32xbf16, #tpu.memory_space<vmem>>, vector<1x8x32xbf16>,
    %c0_22 = arith.constant 0 : index
    %c0_23 = arith.constant 0 : index
    %c0_24 = arith.constant 0 : index
    %8 = vector.load %arg1[%c0_22, %c0_23, %c0_24] : memref<1x8x32xbf16, #tpu.memory_space<vmem>>, vector<1x8x32xbf16>
    %9 = vector.shape_cast %8 : vector<1x8x32xbf16> to vector<8x32xbf16>
    %10 = arith.extf %9 : vector<8x32xbf16> to vector<8x32xf32>
    %c0_25 = arith.constant 0 : index
    %c0_26 = arith.constant 0 : index
    %11 = vector.load %arg4[%c0_25, %c0_26] : memref<1x32xf32, #tpu.memory_space<vmem>>, vector<1x32xf32>
    %12 = vector.shape_cast %11 : vector<1x32xf32> to vector<32xf32>
    %13 = arith.mulf %10, %10 : vector<8x32xf32>
    %cst = arith.constant dense<0.000000e+00> : vector<8xf32>
    %14 = vector.multi_reduction <add>, %13, %cst [1] : vector<8x32xf32> to vector<8xf32>
    %15 = vector.shape_cast %14 : vector<8xf32> to vector<8x1xf32>
    %cst_27 = arith.constant 3.200000e+01 : f32
    %16 = vector.broadcast %cst_27 : f32 to vector<8x1xf32>
    %17 = arith.divf %15, %16 : vector<8x1xf32>
    %cst_28 = arith.constant 9.99999997E-7 : f32
    %18 = vector.broadcast %cst_28 : f32 to vector<8x1xf32>
    %19 = arith.addf %17, %18 : vector<8x1xf32>
    %20 = math.rsqrt %19 : vector<8x1xf32>
    %21 = vector.broadcast %20 : vector<8x1xf32> to vector<8x32xf32>
    %22 = arith.mulf %10, %21 : vector<8x32xf32>
    %23 = vector.shape_cast %12 : vector<32xf32> to vector<1x32xf32>
    %24 = vector.broadcast %23 : vector<1x32xf32> to vector<8x32xf32>
    %25 = arith.mulf %22, %24 : vector<8x32xf32>
    %c0_29 = arith.constant 0 : index
    %c0_30 = arith.constant 0 : index
    %26 = vector.load %arg5[%c0_29, %c0_30] : memref<192x32xbf16, #tpu.memory_space<vmem>>, vector<192x32xbf16>
    %27 = arith.truncf %25 : vector<8x32xf32> to vector<8x32xbf16>
    %cst_31 = arith.constant dense<0.000000e+00> : vector<192x8xf32>
    %28 = tpu.matmul %26, %27, %cst_31 {dimension_numbers = #tpu.dot_dimension_numbers<[1], [1], [0], [0], [0, 0, 1, 0], [], []>} : vector<192x32xbf16>, vector<8x32xbf16>, vector<192x8xf32> -> vector<192x8xf32>
    %29 = arith.truncf %28 : vector<192x8xf32> to vector<192x8xbf16>
    %c0_32 = arith.constant 0 : index
    %c0_33 = arith.constant 0 : index
    %30 = vector.load %arg10[%c0_32, %c0_33] : memref<192x8xbf16, #tpu.memory_space<vmem>>, vector<192x8xbf16>
    tpu.vector_store %arg10[%c0_32, %c0_33], %29 {strides = array<i32>} : memref<192x8xbf16, #tpu.memory_space<vmem>>, vector<192x8xbf16>,
    %c0_i32 = arith.constant 0 : i32
    %c4_i32 = arith.constant 4 : i32
    %31 = arith.addi %c0_i32, %c4_i32 : i32
    %c1_i32 = arith.constant 1 : i32
    scf.for %arg12 = %c0_i32 to %31 step %c1_i32  : i32 {
      %c16_i32 = arith.constant 16 : i32
      %40 = arith.muli %arg12, %c16_i32 : i32
      %41 = tpu.assume_multiple %40, 16 : i32
      %c16_i32_43 = arith.constant 16 : i32
      %42 = arith.muli %arg12, %c16_i32_43 : i32
      %c64_i32 = arith.constant 64 : i32
      %43 = arith.addi %c64_i32, %42 : i32
      %44 = tpu.assume_multiple %43, 16 : i32
      %c16_i32_44 = arith.constant 16 : i32
      %45 = arith.muli %arg12, %c16_i32_44 : i32
      %c128_i32 = arith.constant 128 : i32
      %46 = arith.addi %c128_i32, %45 : i32
      %47 = tpu.assume_multiple %46, 16 : i32
      %48 = arith.index_cast %41 : i32 to index
      %c0_45 = arith.constant 0 : index
      %49 = vector.load %arg10[%48, %c0_45] : memref<192x8xbf16, #tpu.memory_space<vmem>>, vector<16x8xbf16>
      %50 = arith.index_cast %44 : i32 to index
      %c0_46 = arith.constant 0 : index
      %51 = vector.load %arg10[%50, %c0_46] : memref<192x8xbf16, #tpu.memory_space<vmem>>, vector<16x8xbf16>
      %52 = arith.index_cast %47 : i32 to index
      %c0_47 = arith.constant 0 : index
      %53 = vector.load %arg10[%52, %c0_47] : memref<192x8xbf16, #tpu.memory_space<vmem>>, vector<16x8xbf16>
      %cst_48 = arith.constant dense<0.000000e+00> : vector<8x8xf32>
      %54 = tpu.matmul %49, %51, %cst_48 {dimension_numbers = #tpu.dot_dimension_numbers<[0], [0], [1], [1], [0, 1, 1, 1], [], []>} : vector<16x8xbf16>, vector<16x8xbf16>, vector<8x8xf32> -> vector<8x8xf32>
      %cst_49 = arith.constant dense<0xFF800000> : vector<8xf32>
      %55 = vector.multi_reduction <maximumf>, %54, %cst_49 [1] : vector<8x8xf32> to vector<8xf32>
      %56 = vector.shape_cast %55 : vector<8xf32> to vector<8x1xf32>
      %57 = vector.broadcast %56 : vector<8x1xf32> to vector<8x8xf32>
      %58 = arith.subf %54, %57 : vector<8x8xf32>
      %59 = math.exp %58 : vector<8x8xf32>
      %cst_50 = arith.constant dense<0.000000e+00> : vector<8xf32>
      %60 = vector.multi_reduction <add>, %59, %cst_50 [1] : vector<8x8xf32> to vector<8xf32>
      %61 = vector.shape_cast %60 : vector<8xf32> to vector<8x1xf32>
      %62 = tpu.reciprocal %61 {approx = true} : vector<8x1xf32> -> vector<8x1xf32>
      %63 = vector.broadcast %62 : vector<8x1xf32> to vector<8x8xf32>
      %64 = arith.mulf %59, %63 : vector<8x8xf32>
      %65 = arith.truncf %64 : vector<8x8xf32> to vector<8x8xbf16>
      %cst_51 = arith.constant dense<0.000000e+00> : vector<16x8xf32>
      %66 = tpu.matmul %53, %65, %cst_51 {dimension_numbers = #tpu.dot_dimension_numbers<[1], [1], [0], [0], [0, 0, 1, 0], [], []>} : vector<16x8xbf16>, vector<8x8xbf16>, vector<16x8xf32> -> vector<16x8xf32>
      %67 = arith.truncf %66 : vector<16x8xf32> to vector<16x8xbf16>
      %68 = arith.index_cast %41 : i32 to index
      %c0_52 = arith.constant 0 : index
      %69 = vector.load %arg11[%68, %c0_52] : memref<64x8xbf16, #tpu.memory_space<vmem>>, vector<16x8xbf16>
      tpu.vector_store %arg11[%68, %c0_52], %67 {strides = array<i32>} : memref<64x8xbf16, #tpu.memory_space<vmem>>, vector<16x8xbf16>,
    }
    %c4_i32_34 = arith.constant 4 : i32
    %c0_35 = arith.constant 0 : index
    %c0_36 = arith.constant 0 : index
    %32 = vector.load %arg11[%c0_35, %c0_36] : memref<64x8xbf16, #tpu.memory_space<vmem>>, vector<64x8xbf16>
    %c0_37 = arith.constant 0 : index
    %c0_38 = arith.constant 0 : index
    %33 = vector.load %arg6[%c0_37, %c0_38] : memref<64x32xbf16, #tpu.memory_space<vmem>>, vector<64x32xbf16>
    %cst_39 = arith.constant dense<0.000000e+00> : vector<8x32xf32>
    %34 = tpu.matmul %32, %33, %cst_39 {dimension_numbers = #tpu.dot_dimension_numbers<[0], [0], [1], [1], [0, 1, 1, 1], [], []>} : vector<64x8xbf16>, vector<64x32xbf16>, vector<8x32xf32> -> vector<8x32xf32>
    %35 = arith.addf %34, %10 : vector<8x32xf32>
    %36 = arith.truncf %35 : vector<8x32xf32> to vector<8x32xbf16>
    %c0_40 = arith.constant 0 : index
    %c0_41 = arith.constant 0 : index
    %c0_42 = arith.constant 0 : index
    %37 = vector.load %arg7[%c0_40, %c0_41, %c0_42] : memref<1x8x32xbf16, #tpu.memory_space<vmem>>, vector<1x8x32xbf16>
    %38 = vector.shape_cast %37 : vector<1x8x32xbf16> to vector<8x32xbf16>
    %39 = vector.shape_cast %36 : vector<8x32xbf16> to vector<1x8x32xbf16>
    tpu.vector_store %arg7[%c0_40, %c0_41, %c0_42], %39 {strides = array<i32>} : memref<1x8x32xbf16, #tpu.memory_space<vmem>>, vector<1x8x32xbf16>,
    return
  }
  func.func @transform_0(%arg0: i32) -> (i32, i32, i32) {
    %c0_i32 = arith.constant 0 : i32
    %c0_i32_0 = arith.constant 0 : i32
    %c0_i32_1 = arith.constant 0 : i32
    return %arg0, %c0_i32, %c0_i32_0 : i32, i32, i32
  }
  func.func @transform_1(%arg0: i32) -> (i32, i32, i32) {
    %c0_i32 = arith.constant 0 : i32
    %c0_i32_0 = arith.constant 0 : i32
    %c0_i32_1 = arith.constant 0 : i32
    return %arg0, %c0_i32, %c0_i32_0 : i32, i32, i32
  }
  func.func @transform_2(%arg0: i32) -> (i32, i32, i32) {
    %c0_i32 = arith.constant 0 : i32
    %c0_i32_0 = arith.constant 0 : i32
    %c0_i32_1 = arith.constant 0 : i32
    return %arg0, %c0_i32, %c0_i32_0 : i32, i32, i32
  }
  func.func @transform_3(%arg0: i32) -> (i32, i32) {
    %c0_i32 = arith.constant 0 : i32
    %c0_i32_0 = arith.constant 0 : i32
    %c0_i32_1 = arith.constant 0 : i32
    return %c0_i32, %c0_i32_0 : i32, i32
  }
  func.func @transform_4(%arg0: i32) -> (i32, i32) {
    %c0_i32 = arith.constant 0 : i32
    %c0_i32_0 = arith.constant 0 : i32
    %c0_i32_1 = arith.constant 0 : i32
    return %c0_i32, %c0_i32_0 : i32, i32
  }
  func.func @transform_5(%arg0: i32) -> (i32, i32) {
    %c0_i32 = arith.constant 0 : i32
    %c0_i32_0 = arith.constant 0 : i32
    %c0_i32_1 = arith.constant 0 : i32
    return %c0_i32, %c0_i32_0 : i32, i32
  }
  func.func @transform_6(%arg0: i32) -> (i32, i32, i32) {
    %c0_i32 = arith.constant 0 : i32
    %c0_i32_0 = arith.constant 0 : i32
    %c0_i32_1 = arith.constant 0 : i32
    return %arg0, %c0_i32, %c0_i32_0 : i32, i32, i32
  }
  func.func @transform_7(%arg0: i32) -> (i32, i32, i32) {
    %c0_i32 = arith.constant 0 : i32
    %c0_i32_0 = arith.constant 0 : i32
    %c0_i32_1 = arith.constant 0 : i32
    return %arg0, %c0_i32, %c0_i32_0 : i32, i32, i32
  }
  func.func @transform_8(%arg0: i32) -> (i32, i32, i32) {
    %c0_i32 = arith.constant 0 : i32
    %c0_i32_0 = arith.constant 0 : i32
    %c0_i32_1 = arith.constant 0 : i32
    return %arg0, %c0_i32, %c0_i32_0 : i32, i32, i32
  }
}

</mosaic_0001>

<llo_original>
// kernel: tpu_custom_call.1
$region0: #{tpu_custom_call.1}
  #allocation0 [shape = 'u32[]', space=smem, size = 0x4, offset = 0x4, fixed_abs, tag = 'smem constant byte address 0x4 - core index']
  #allocation1 [shape = 'u32[144,128]{1,0:T(1,128)}', space=vmem, size = 0x12000, scoped, tag = 'internal scratch']
  %s0 = inlined_call_operand.hbm [shape: f32[8,128], index: 0, kind: input, shape index: {}]
  %s1 = inlined_call_operand.hbm [shape: f32[8,128], index: 1, kind: output, shape index: {}]
  %s2 = sld [smem:[#allocation0]]
  $region41: #{tpu_custom_call.1} parent=0
    _
  %s4 = ssub.s32 1, %s2
  %s5 = scalar_select 0, %s4, %s2
  $region1: #{tpu_custom_call.1} parent=0
    #allocation2 [shape = 'u8[4096]{0}', space=vmem, size = 0x1000, scoped, tag = 'input window, operand 0, single buffered']
    #allocation3 [shape = 's32[2]{0}', space=sflag, size = 0x8, scoped, tag = 'scoped memory for tpu_custom_call.1']
    #allocation4 [shape = 's32[2]{0}', space=sflag, size = 0x8, scoped, tag = 'scoped memory for tpu_custom_call.1']
    #allocation5 [shape = 'u8[4096]{0}', space=vmem, size = 0x1000, scoped, tag = 'output window, operand 0, single buffered']
    %6 = vsyncpa [#allocation3], 0
    %7 = vsyncpa [#allocation4], 0
    loop: start=0, step=1, limit=4
    $region2: #{tpu_custom_call.1} parent=1 // loop_pre_header
      _
    $region3: #{tpu_custom_call.1} parent=1 // loop_header
      %s9 = sphi 0, %s13
      %p10 = scmp.ge.s32.totalorder %s9, 4
      %s17 = sphi 0, %s17
      %s19 = sphi 0, %s17
      %s20 = sphi 0, %s19
      %s34 = sphi 0, %s20
      %s38 = sphi 0, %s38
      %s40 = sphi 0, %s38
      %s41 = sphi 0, %s40
      %s55 = sphi 0, %s41
    $region4: #{tpu_custom_call.1} parent=1 // loop_header_branch
      %12 = sbr.rel (%p10) target = $region8
    $region5: #{tpu_custom_call.1} parent=1 // loop_body
      %s14 = ssub.s32 %s9, 1
      %s15 = ssub.s32 %s9, 2
      %s16 = sadd.s32 %s9, 1
      %s18 = sadd.s32 %s17, 1
      %p21 = scmp.eq.s32.totalorder %s9, 1
      %p22 = scmp.ne.s32.totalorder %s17, %s19
      %p23 = scmp.eq.s32.totalorder %s9, 0
      %p24 = por %p22, %p23
      %p25 = scmp.ne.s32.totalorder %s17, %s19
      %p26 = scmp.eq.s32.totalorder %s14, 1
      %p27 = por %p25, %p26
      %p28 = scmp.ne.s32.totalorder %s19, %s20
      %p29 = scmp.eq.s32.totalorder %s14, 0
      %p30 = por %p28, %p29
      %p31 = scmp.ne.s32.totalorder %s19, %s20
      %p32 = scmp.eq.s32.totalorder %s15, 1
      %p33 = por %p31, %p32
      %p35 = scmp.ne.s32.totalorder %s20, %s34
      %p36 = scmp.eq.s32.totalorder %s15, 0
      %p37 = por %p35, %p36
      %s39 = sadd.s32 %s38, 1
      %p42 = scmp.eq.s32.totalorder %s9, 1
      %p43 = scmp.ne.s32.totalorder %s38, %s40
      %p44 = scmp.eq.s32.totalorder %s9, 0
      %p45 = por %p43, %p44
      %p46 = scmp.ne.s32.totalorder %s38, %s40
      %p47 = scmp.eq.s32.totalorder %s14, 1
      %p48 = por %p46, %p47
      %p49 = scmp.ne.s32.totalorder %s40, %s41
      %p50 = scmp.eq.s32.totalorder %s14, 0
      %p51 = por %p49, %p50
      %p52 = scmp.ne.s32.totalorder %s40, %s41
      %p53 = scmp.eq.s32.totalorder %s15, 1
      %p54 = por %p52, %p53
      %p56 = scmp.ne.s32.totalorder %s41, %s55
      %p57 = scmp.eq.s32.totalorder %s15, 0
      %p58 = por %p56, %p57
      %p59 = scmp.le.s32.totalorder 1, %s9
      %p60 = scmp.lt.s32.totalorder %s9, 3
      %p61 = pnand %p59, %p60
      %p62 = pneg %p61
      // Predicated region
      $region9: #{tpu_custom_call.1} parent=5 // pred_check
        _
      $region10: #{tpu_custom_call.1} parent=5 // pred_check_branch
        %64 = sbr.rel (%p61) target = $region12
      $region11: #{tpu_custom_call.1} parent=5 // pred_region
        %s65 = ssub.s32 %s9, 1
        // Predicated region
        $region13: #{tpu_custom_call.1} parent=11 // pred_check
          %p66 = pneg %p30
        $region14: #{tpu_custom_call.1} parent=11 // pred_check_branch
          %68 = sbr.rel (%p66) target = $region16
        $region15: #{tpu_custom_call.1} parent=11 // pred_region
          %s70 = ssub.s32 128, 128
          %71 = vsyncadd [#allocation3], %s70
          %s73 = sshll.u32 [#allocation2], 4
          %s74 = int_to_ptr.vmem [resolvable:$true] %s73
          %76 = dma.hbm_to_vmem [thread:$0]  %s0, 128, %s74, [#allocation3]
        $region16: #{tpu_custom_call.1} parent=11 // pred_fallthru
          _
      $region12: #{tpu_custom_call.1} parent=5 // pred_fallthru
        _
      %p77 = scmp.lt.s32.totalorder %s9, 2
      // Predicated region
      $region17: #{tpu_custom_call.1} parent=5 // pred_check
        %p78 = pneg %p77
      $region18: #{tpu_custom_call.1} parent=5 // pred_check_branch
        %80 = sbr.rel (%p78) target = $region20
      $region19: #{tpu_custom_call.1} parent=5 // pred_region
        _
      $region20: #{tpu_custom_call.1} parent=5 // pred_fallthru
        _
      %p81 = scmp.le.s32.totalorder 1, %s9
      %p82 = scmp.lt.s32.totalorder %s9, 3
      %p83 = pnand %p81, %p82
      %p84 = pneg %p83
      // Predicated region
      $region21: #{tpu_custom_call.1} parent=5 // pred_check
        _
      $region22: #{tpu_custom_call.1} parent=5 // pred_check_branch
        %86 = sbr.rel (%p83) target = $region24
      $region23: #{tpu_custom_call.1} parent=5 // pred_region
        %s87 = ssub.s32 %s9, 1
        // Predicated region
        $region25: #{tpu_custom_call.1} parent=23 // pred_check
          %p88 = pneg %p30
        $region26: #{tpu_custom_call.1} parent=23 // pred_check_branch
          %90 = sbr.rel (%p88) target = $region28
        $region27: #{tpu_custom_call.1} parent=23 // pred_region
          %91 = dma.done [#allocation3], 128
        $region28: #{tpu_custom_call.1} parent=23 // pred_fallthru
          _
        %p92 = pneg %p30
        %p93 = pneg %p27
        %p94 = pneg %p51
        %p95 = pneg %p48
        %v96 = vld [vmem:[#allocation2] sm:$0xff]
        %97 = vst [vmem:[#allocation5] sm:$0xff] %v96
        // Predicated region
        $region29: #{tpu_custom_call.1} parent=23 // pred_check
          %p98 = pneg %p48
        $region30: #{tpu_custom_call.1} parent=23 // pred_check_branch
          %100 = sbr.rel (%p98) target = $region32
        $region31: #{tpu_custom_call.1} parent=23 // pred_region
          %s102 = ssub.s32 128, 128
          %103 = vsyncadd [#allocation4], %s102
          %s105 = sshll.u32 [#allocation5], 4
          %s106 = int_to_ptr.vmem [resolvable:$true] %s105
          %108 = dma.vmem_to_hbm [thread:$0]  %s106, 128, %s1, [#allocation4]
        $region32: #{tpu_custom_call.1} parent=23 // pred_fallthru
          _
        // Predicated region
        $region33: #{tpu_custom_call.1} parent=23 // pred_check
          %p109 = pneg %p48
        $region34: #{tpu_custom_call.1} parent=23 // pred_check_branch
          %111 = sbr.rel (%p109) target = $region36
        $region35: #{tpu_custom_call.1} parent=23 // pred_region
          %112 = dma.done [#allocation4], 128
        $region36: #{tpu_custom_call.1} parent=23 // pred_fallthru
          _
      $region24: #{tpu_custom_call.1} parent=5 // pred_fallthru
        _
      %p113 = scmp.le.s32.totalorder 2, %s9
      // Predicated region
      $region37: #{tpu_custom_call.1} parent=5 // pred_check
        %p114 = pneg %p113
      $region38: #{tpu_custom_call.1} parent=5 // pred_check_branch
        %116 = sbr.rel (%p114) target = $region40
      $region39: #{tpu_custom_call.1} parent=5 // pred_region
        %s117 = ssub.s32 %s9, 2
      $region40: #{tpu_custom_call.1} parent=5 // pred_fallthru
        _
    $region6: #{tpu_custom_call.1} parent=1 // loop_footer
      %s13 = sadd.s32 1, %s9
    $region7: #{tpu_custom_call.1} parent=1 // loop_footer_branch
      %8 = sbr.rel target = $region3
    $region8: #{tpu_custom_call.1} parent=1 // loop_exit
      _
    %118 = vsyncpa [#allocation3], 1
    %s119 = scalar_lea.sflag [#allocation3], 1
    %120 = vsyncpa %s119, 1
    %121 = vsyncpa [#allocation4], 1
    %s122 = scalar_lea.sflag [#allocation4], 1
    %123 = vsyncpa %s122, 1

// kernel: tpu_custom_call.1
$region0: #{tpu_custom_call.1}
  #allocation0 [shape = 'u32[]', space=smem, size = 0x4, offset = 0x4, fixed_abs, tag = 'smem constant byte address 0x4 - core index']
  #allocation1 [shape = 'u32[144,128]{1,0:T(1,128)}', space=vmem, size = 0x12000, scoped, tag = 'internal scratch']
  #allocation2 [shape = 'bf16[192,8]{1,0:T(8,128)(2,1)}', space=vmem, size = 0xc000, scoped, tag = 'scratch operand']
  #allocation3 [shape = 'bf16[64,8]{1,0:T(8,128)(2,1)}', space=vmem, size = 0x4000, scoped, tag = 'scratch operand']
  %s0 = inlined_call_operand.vmem [shape: bf16[2,8,32], index: 0, kind: input, shape index: {}]
  %s1 = inlined_call_operand.vmem [shape: bf16[2,16,32], index: 1, kind: input, shape index: {}]
  %s2 = inlined_call_operand.vmem [shape: bf16[2,16,32], index: 2, kind: input, shape index: {}]
  %s3 = inlined_call_operand.vmem [shape: f32[1,32], index: 3, kind: input, shape index: {}]
  %s4 = inlined_call_operand.vmem [shape: bf16[192,32], index: 4, kind: input, shape index: {}]
  %s5 = inlined_call_operand.vmem [shape: bf16[64,32], index: 5, kind: input, shape index: {}]
  %s6 = inlined_call_operand.hbm [shape: bf16[2,8,32], index: 6, kind: output, shape index: {0}]
  %s7 = inlined_call_operand.hbm [shape: bf16[2,16,32], index: 7, kind: output, shape index: {1}]
  %s8 = inlined_call_operand.hbm [shape: bf16[2,16,32], index: 8, kind: output, shape index: {2}]
  %9 = xla_tuple %s6, %s7, %s8
  %s10 = sld [smem:[#allocation0]]
  $region80: #{tpu_custom_call.1} parent=0
    _
  %s12 = ssub.s32 1, %s10
  %s13 = scalar_select 0, %s12, %s10
  $region1: #{tpu_custom_call.1} parent=0
    #allocation4 [shape = 'u8[4096]{0}', space=vmem, size = 0x1000, scoped, tag = 'output window, operand 0']
    #allocation5 [shape = 's32[2]{0}', space=sflag, size = 0x8, scoped, tag = 'scoped memory for tpu_custom_call.1']
    #allocation6 [shape = 'u8[8192]{0}', space=vmem, size = 0x2000, scoped, tag = 'output window, operand 1']
    #allocation7 [shape = 's32[2]{0}', space=sflag, size = 0x8, scoped, tag = 'scoped memory for tpu_custom_call.1']
    #allocation8 [shape = 'u8[8192]{0}', space=vmem, size = 0x2000, scoped, tag = 'output window, operand 2']
    %14 = vsyncpa [#allocation5], 0
    %s15 = scalar_lea.sflag [#allocation5], 1
    %16 = vsyncpa %s15, 0
    %17 = vsyncpa [#allocation7], 0
    %s18 = scalar_lea.sflag [#allocation7], 1
    %19 = vsyncpa %s18, 0
    loop: start=0, step=1, limit=4
    $region2: #{tpu_custom_call.1} parent=1 // loop_pre_header
      _
    $region3: #{tpu_custom_call.1} parent=1 // loop_header
      %s21 = sphi 0, %s25
      %p22 = scmp.ge.s32.totalorder %s21, 4
      %s31 = sphi 0, %s33
      %s34 = sphi 0, %s31
      %s35 = sphi 0, %s34
      %s51 = sphi 0, %s35
      %s57 = sphi 0, %s59
      %s60 = sphi 0, %s57
      %s61 = sphi 0, %s60
      %s77 = sphi 0, %s61
      %s83 = sphi 0, %s85
      %s86 = sphi 0, %s83
      %s87 = sphi 0, %s86
      %s103 = sphi 0, %s87
      %s107 = sphi 0, %s107
      %s109 = sphi 0, %s107
      %s110 = sphi 0, %s109
      %s124 = sphi 0, %s110
      %s128 = sphi 0, %s128
      %s130 = sphi 0, %s128
      %s131 = sphi 0, %s130
      %s145 = sphi 0, %s131
      %s149 = sphi 0, %s149
      %s151 = sphi 0, %s149
      %s152 = sphi 0, %s151
      %s166 = sphi 0, %s152
      %s172 = sphi 0, %s174
      %s175 = sphi 0, %s172
      %s176 = sphi 0, %s175
      %s192 = sphi 0, %s176
      %s198 = sphi 0, %s200
      %s201 = sphi 0, %s198
      %s202 = sphi 0, %s201
      %s218 = sphi 0, %s202
      %s224 = sphi 0, %s226
      %s227 = sphi 0, %s224
      %s228 = sphi 0, %s227
      %s244 = sphi 0, %s228
    $region4: #{tpu_custom_call.1} parent=1 // loop_header_branch
      %24 = sbr.rel (%p22) target = $region8
    $region5: #{tpu_custom_call.1} parent=1 // loop_body
      %s26 = ssub.s32 %s21, 1
      %s27 = ssub.s32 %s21, 2
      %s28 = sadd.s32 %s21, 1
      %s29 = ssub.s32 %s21, %s28
      %p30 = scmp.eq.s32.totalorder %s29, 0
      %s32 = sadd.s32 %s31, 1
      %s33 = scalar_select %p30, %s31, %s32
      %p36 = pneg %p30
      %p37 = scmp.eq.s32.totalorder %s21, 1
      %p38 = por %p36, %p37
      %p39 = scmp.ne.s32.totalorder %s31, %s34
      %p40 = scmp.eq.s32.totalorder %s21, 0
      %p41 = por %p39, %p40
      %p42 = scmp.ne.s32.totalorder %s31, %s34
      %p43 = scmp.eq.s32.totalorder %s26, 1
      %p44 = por %p42, %p43
      %p45 = scmp.ne.s32.totalorder %s34, %s35
      %p46 = scmp.eq.s32.totalorder %s26, 0
      %p47 = por %p45, %p46
      %p48 = scmp.ne.s32.totalorder %s34, %s35
      %p49 = scmp.eq.s32.totalorder %s27, 1
      %p50 = por %p48, %p49
      %p52 = scmp.ne.s32.totalorder %s35, %s51
      %p53 = scmp.eq.s32.totalorder %s27, 0
      %p54 = por %p52, %p53
      %s55 = ssub.s32 %s21, %s28
      %p56 = scmp.eq.s32.totalorder %s55, 0
      %s58 = sadd.s32 %s57, 1
      %s59 = scalar_select %p56, %s57, %s58
      %p62 = pneg %p56
      %p63 = scmp.eq.s32.totalorder %s21, 1
      %p64 = por %p62, %p63
      %p65 = scmp.ne.s32.totalorder %s57, %s60
      %p66 = scmp.eq.s32.totalorder %s21, 0
      %p67 = por %p65, %p66
      %p68 = scmp.ne.s32.totalorder %s57, %s60
      %p69 = scmp.eq.s32.totalorder %s26, 1
      %p70 = por %p68, %p69
      %p71 = scmp.ne.s32.totalorder %s60, %s61
      %p72 = scmp.eq.s32.totalorder %s26, 0
      %p73 = por %p71, %p72
      %p74 = scmp.ne.s32.totalorder %s60, %s61
      %p75 = scmp.eq.s32.totalorder %s27, 1
      %p76 = por %p74, %p75
      %p78 = scmp.ne.s32.totalorder %s61, %s77
      %p79 = scmp.eq.s32.totalorder %s27, 0
      %p80 = por %p78, %p79
      %s81 = ssub.s32 %s21, %s28
      %p82 = scmp.eq.s32.totalorder %s81, 0
      %s84 = sadd.s32 %s83, 1
      %s85 = scalar_select %p82, %s83, %s84
      %p88 = pneg %p82
      %p89 = scmp.eq.s32.totalorder %s21, 1
      %p90 = por %p88, %p89
      %p91 = scmp.ne.s32.totalorder %s83, %s86
      %p92 = scmp.eq.s32.totalorder %s21, 0
      %p93 = por %p91, %p92
      %p94 = scmp.ne.s32.totalorder %s83, %s86
      %p95 = scmp.eq.s32.totalorder %s26, 1
      %p96 = por %p94, %p95
      %p97 = scmp.ne.s32.totalorder %s86, %s87
      %p98 = scmp.eq.s32.totalorder %s26, 0
      %p99 = por %p97, %p98
      %p100 = scmp.ne.s32.totalorder %s86, %s87
      %p101 = scmp.eq.s32.totalorder %s27, 1
      %p102 = por %p100, %p101
      %p104 = scmp.ne.s32.totalorder %s87, %s103
      %p105 = scmp.eq.s32.totalorder %s27, 0
      %p106 = por %p104, %p105
      %s108 = sadd.s32 %s107, 1
      %p111 = scmp.eq.s32.totalorder %s21, 1
      %p112 = scmp.ne.s32.totalorder %s107, %s109
      %p113 = scmp.eq.s32.totalorder %s21, 0
      %p114 = por %p112, %p113
      %p115 = scmp.ne.s32.totalorder %s107, %s109
      %p116 = scmp.eq.s32.totalorder %s26, 1
      %p117 = por %p115, %p116
      %p118 = scmp.ne.s32.totalorder %s109, %s110
      %p119 = scmp.eq.s32.totalorder %s26, 0
      %p120 = por %p118, %p119
      %p121 = scmp.ne.s32.totalorder %s109, %s110
      %p122 = scmp.eq.s32.totalorder %s27, 1
      %p123 = por %p121, %p122
      %p125 = scmp.ne.s32.totalorder %s110, %s124
      %p126 = scmp.eq.s32.totalorder %s27, 0
      %p127 = por %p125, %p126
      %s129 = sadd.s32 %s128, 1
      %p132 = scmp.eq.s32.totalorder %s21, 1
      %p133 = scmp.ne.s32.totalorder %s128, %s130
      %p134 = scmp.eq.s32.totalorder %s21, 0
      %p135 = por %p133, %p134
      %p136 = scmp.ne.s32.totalorder %s128, %s130
      %p137 = scmp.eq.s32.totalorder %s26, 1
      %p138 = por %p136, %p137
      %p139 = scmp.ne.s32.totalorder %s130, %s131
      %p140 = scmp.eq.s32.totalorder %s26, 0
      %p141 = por %p139, %p140
      %p142 = scmp.ne.s32.totalorder %s130, %s131
      %p143 = scmp.eq.s32.totalorder %s27, 1
      %p144 = por %p142, %p143
      %p146 = scmp.ne.s32.totalorder %s131, %s145
      %p147 = scmp.eq.s32.totalorder %s27, 0
      %p148 = por %p146, %p147
      %s150 = sadd.s32 %s149, 1
      %p153 = scmp.eq.s32.totalorder %s21, 1
      %p154 = scmp.ne.s32.totalorder %s149, %s151
      %p155 = scmp.eq.s32.totalorder %s21, 0
      %p156 = por %p154, %p155
      %p157 = scmp.ne.s32.totalorder %s149, %s151
      %p158 = scmp.eq.s32.totalorder %s26, 1
      %p159 = por %p157, %p158
      %p160 = scmp.ne.s32.totalorder %s151, %s152
      %p161 = scmp.eq.s32.totalorder %s26, 0
      %p162 = por %p160, %p161
      %p163 = scmp.ne.s32.totalorder %s151, %s152
      %p164 = scmp.eq.s32.totalorder %s27, 1
      %p165 = por %p163, %p164
      %p167 = scmp.ne.s32.totalorder %s152, %s166
      %p168 = scmp.eq.s32.totalorder %s27, 0
      %p169 = por %p167, %p168
      %s170 = ssub.s32 %s21, %s28
      %p171 = scmp.eq.s32.totalorder %s170, 0
      %s173 = sadd.s32 %s172, 1
      %s174 = scalar_select %p171, %s172, %s173
      %p177 = pneg %p171
      %p178 = scmp.eq.s32.totalorder %s21, 1
      %p179 = por %p177, %p178
      %p180 = scmp.ne.s32.totalorder %s172, %s175
      %p181 = scmp.eq.s32.totalorder %s21, 0
      %p182 = por %p180, %p181
      %p183 = scmp.ne.s32.totalorder %s172, %s175
      %p184 = scmp.eq.s32.totalorder %s26, 1
      %p185 = por %p183, %p184
      %p186 = scmp.ne.s32.totalorder %s175, %s176
      %p187 = scmp.eq.s32.totalorder %s26, 0
      %p188 = por %p186, %p187
      %p189 = scmp.ne.s32.totalorder %s175, %s176
      %p190 = scmp.eq.s32.totalorder %s27, 1
      %p191 = por %p189, %p190
      %p193 = scmp.ne.s32.totalorder %s176, %s192
      %p194 = scmp.eq.s32.totalorder %s27, 0
      %p195 = por %p193, %p194
      %s196 = ssub.s32 %s21, %s28
      %p197 = scmp.eq.s32.totalorder %s196, 0
      %s199 = sadd.s32 %s198, 1
      %s200 = scalar_select %p197, %s198, %s199
      %p203 = pneg %p197
      %p204 = scmp.eq.s32.totalorder %s21, 1
      %p205 = por %p203, %p204
      %p206 = scmp.ne.s32.totalorder %s198, %s201
      %p207 = scmp.eq.s32.totalorder %s21, 0
      %p208 = por %p206, %p207
      %p209 = scmp.ne.s32.totalorder %s198, %s201
      %p210 = scmp.eq.s32.totalorder %s26, 1
      %p211 = por %p209, %p210
      %p212 = scmp.ne.s32.totalorder %s201, %s202
      %p213 = scmp.eq.s32.totalorder %s26, 0
      %p214 = por %p212, %p213
      %p215 = scmp.ne.s32.totalorder %s201, %s202
      %p216 = scmp.eq.s32.totalorder %s27, 1
      %p217 = por %p215, %p216
      %p219 = scmp.ne.s32.totalorder %s202, %s218
      %p220 = scmp.eq.s32.totalorder %s27, 0
      %p221 = por %p219, %p220
      %s222 = ssub.s32 %s21, %s28
      %p223 = scmp.eq.s32.totalorder %s222, 0
      %s225 = sadd.s32 %s224, 1
      %s226 = scalar_select %p223, %s224, %s225
      %p229 = pneg %p223
      %p230 = scmp.eq.s32.totalorder %s21, 1
      %p231 = por %p229, %p230
      %p232 = scmp.ne.s32.totalorder %s224, %s227
      %p233 = scmp.eq.s32.totalorder %s21, 0
      %p234 = por %p232, %p233
      %p235 = scmp.ne.s32.totalorder %s224, %s227
      %p236 = scmp.eq.s32.totalorder %s26, 1
      %p237 = por %p235, %p236
      %p238 = scmp.ne.s32.totalorder %s227, %s228
      %p239 = scmp.eq.s32.totalorder %s26, 0
      %p240 = por %p238, %p239
      %p241 = scmp.ne.s32.totalorder %s227, %s228
      %p242 = scmp.eq.s32.totalorder %s27, 1
      %p243 = por %p241, %p242
      %p245 = scmp.ne.s32.totalorder %s228, %s244
      %p246 = scmp.eq.s32.totalorder %s27, 0
      %p247 = por %p245, %p246
      %p248 = scmp.le.s32.totalorder 1, %s21
      %p249 = scmp.lt.s32.totalorder %s21, 3
      %p250 = pnand %p248, %p249
      %p251 = pneg %p250
      // Predicated region
      $region9: #{tpu_custom_call.1} parent=5 // pred_check
        _
      $region10: #{tpu_custom_call.1} parent=5 // pred_check_branch
        %253 = sbr.rel (%p250) target = $region12
      $region11: #{tpu_custom_call.1} parent=5 // pred_region
        %s254 = ssub.s32 %s21, 1
        // Predicated region
        $region13: #{tpu_custom_call.1} parent=11 // pred_check
          %p255 = pneg %p120
        $region14: #{tpu_custom_call.1} parent=11 // pred_check_branch
          %257 = sbr.rel (%p255) target = $region16
        $region15: #{tpu_custom_call.1} parent=11 // pred_region
          _
        $region16: #{tpu_custom_call.1} parent=11 // pred_fallthru
          _
        // Predicated region
        $region17: #{tpu_custom_call.1} parent=11 // pred_check
          %p258 = pneg %p141
        $region18: #{tpu_custom_call.1} parent=11 // pred_check_branch
          %260 = sbr.rel (%p258) target = $region20
        $region19: #{tpu_custom_call.1} parent=11 // pred_region
          _
        $region20: #{tpu_custom_call.1} parent=11 // pred_fallthru
          _
        // Predicated region
        $region21: #{tpu_custom_call.1} parent=11 // pred_check
          %p261 = pneg %p162
        $region22: #{tpu_custom_call.1} parent=11 // pred_check_branch
          %263 = sbr.rel (%p261) target = $region24
        $region23: #{tpu_custom_call.1} parent=11 // pred_region
          _
        $region24: #{tpu_custom_call.1} parent=11 // pred_fallthru
          _
      $region12: #{tpu_custom_call.1} parent=5 // pred_fallthru
        _
      %p264 = scmp.lt.s32.totalorder %s21, 2
      // Predicated region
      $region25: #{tpu_custom_call.1} parent=5 // pred_check
        %p265 = pneg %p264
      $region26: #{tpu_custom_call.1} parent=5 // pred_check_branch
        %267 = sbr.rel (%p265) target = $region28
      $region27: #{tpu_custom_call.1} parent=5 // pred_region
        // Predicated region
        $region29: #{tpu_custom_call.1} parent=27 // pred_check
          %p268 = pneg %p41
        $region30: #{tpu_custom_call.1} parent=27 // pred_check_branch
          %270 = sbr.rel (%p268) target = $region32
        $region31: #{tpu_custom_call.1} parent=27 // pred_region
          %p271 = scmp.lt.s32.totalorder %s21, 1
          %s272 = scalar_select %p271, %s21, 1
          %s273 = smul.addr %s272, 4
          %s274 = scalar_lea.vmem %s0, %s273
        $region32: #{tpu_custom_call.1} parent=27 // pred_fallthru
          _
        // Predicated region
        $region33: #{tpu_custom_call.1} parent=27 // pred_check
          %p275 = pneg %p67
        $region34: #{tpu_custom_call.1} parent=27 // pred_check_branch
          %277 = sbr.rel (%p275) target = $region36
        $region35: #{tpu_custom_call.1} parent=27 // pred_region
          %p278 = scmp.lt.s32.totalorder %s21, 1
          %s279 = scalar_select %p278, %s21, 1
          %s280 = smul.addr %s279, 2
          %s281 = smul.addr %s280, 4
          %s282 = scalar_lea.vmem %s1, %s281
        $region36: #{tpu_custom_call.1} parent=27 // pred_fallthru
          _
        // Predicated region
        $region37: #{tpu_custom_call.1} parent=27 // pred_check
          %p283 = pneg %p93
        $region38: #{tpu_custom_call.1} parent=27 // pred_check_branch
          %285 = sbr.rel (%p283) target = $region40
        $region39: #{tpu_custom_call.1} parent=27 // pred_region
          %p286 = scmp.lt.s32.totalorder %s21, 1
          %s287 = scalar_select %p286, %s21, 1
          %s288 = smul.addr %s287, 2
          %s289 = smul.addr %s288, 4
          %s290 = scalar_lea.vmem %s2, %s289
        $region40: #{tpu_custom_call.1} parent=27 // pred_fallthru
          _
      $region28: #{tpu_custom_call.1} parent=5 // pred_fallthru
        _
      %p291 = scmp.le.s32.totalorder 1, %s21
      %p292 = scmp.lt.s32.totalorder %s21, 3
      %p293 = pnand %p291, %p292
      %p294 = pneg %p293
      // Predicated region
      $region41: #{tpu_custom_call.1} parent=5 // pred_check
        _
      $region42: #{tpu_custom_call.1} parent=5 // pred_check_branch
        %296 = sbr.rel (%p293) target = $region44
      $region43: #{tpu_custom_call.1} parent=5 // pred_region
        %s297 = ssub.s32 %s21, 1
        %p298 = scmp.lt.s32.totalorder %s26, 1
        %s299 = scalar_select %p298, %s26, 1
        %s300 = smul.addr %s299, 4
        %s301 = scalar_lea.vmem %s0, %s300
        %p302 = pneg %p47
        %p303 = pneg %p44
        %p304 = scmp.lt.s32.totalorder %s26, 1
        %s305 = scalar_select %p304, %s26, 1
        %s306 = smul.addr %s305, 2
        %s307 = smul.addr %s306, 4
        %s308 = scalar_lea.vmem %s1, %s307
        %p309 = pneg %p73
        %p310 = pneg %p70
        %p311 = scmp.lt.s32.totalorder %s26, 1
        %s312 = scalar_select %p311, %s26, 1
        %s313 = smul.addr %s312, 2
        %s314 = smul.addr %s313, 4
        %s315 = scalar_lea.vmem %s2, %s314
        %p316 = pneg %p99
        %p317 = pneg %p96
        %p318 = pneg %p120
        %p319 = pneg %p117
        %p320 = pneg %p141
        %p321 = pneg %p138
        %p322 = pneg %p162
        %p323 = pneg %p159
        %p324 = pneg %p188
        %p325 = pneg %p185
        %s326 = sand.u32 %s175, 1
        %s327 = scalar_lea.sflag [#allocation5], %s326
        %s328 = sand.u32 %s175, 1
        %s329 = smul.addr %s328, 4
        %s330 = scalar_lea.vmem [#allocation4], %s329
        %p331 = pneg %p214
        %p332 = pneg %p211
        %s333 = sand.u32 %s26, 1
        %s334 = scalar_lea.sflag [#allocation7], %s333
        %s335 = sand.u32 %s201, 1
        %s336 = smul.addr %s335, 8
        %s337 = scalar_lea.vmem [#allocation6], %s336
        %p338 = pneg %p240
        %p339 = pneg %p237
        %s340 = sand.u32 %s26, 1
        %s341 = scalar_lea.sflag [#allocation7], %s340
        %s342 = sand.u32 %s227, 1
        %s343 = smul.addr %s342, 8
        %s344 = scalar_lea.vmem [#allocation8], %s343
        %p345 = scmp.lt.s32.totalorder %s26, 1
        %s346 = scalar_select %p345, %s26, 1
        %s347 = smul.addr %s346, 4
        %s348 = scalar_lea.vmem %s0, %s347
        %p349 = scmp.lt.s32.totalorder %s26, 1
        %s350 = scalar_select %p349, %s26, 1
        %s351 = smul.addr %s350, 2
        %s352 = smul.addr %s351, 4
        %s353 = scalar_lea.vmem %s1, %s352
        %p354 = scmp.lt.s32.totalorder %s26, 1
        %s355 = scalar_select %p354, %s26, 1
        %s356 = smul.addr %s355, 2
        %s357 = smul.addr %s356, 4
        %s358 = scalar_lea.vmem %s2, %s357
        %v360 = vld [vmem:[%s353 + $0x4] sm:$0xf]
        %vm361 = vcmask 257024
        %362 = vst.msk [vmem:[%s337] sm:$0xf] %vm361, %v360
        %v363 = vld [vmem:[%s348] sm:$0xf]
        %364 = vst.msk [vmem:[%s337 + $0x4] sm:$0xf] %vm361, %v363
        %v365 = vld [vmem:[%s358 + $0x4] sm:$0xf]
        %366 = vst.msk [vmem:[%s344] sm:$0xf] %vm361, %v365
        %v367 = vld [vmem:[%s348] sm:$0xf]
        %368 = vst.msk [vmem:[%s344 + $0x4] sm:$0xf] %vm361, %v367
        %v369 = vld [vmem:[%s348] sm:$0xf]
        %v370 = vunpack.c.l.bf16 %v369
        %v371 = vld [vmem:[%s3] sm:$0x1]
        %v372 = vmul.f32 %v370, %v370
        %vm373 = vcmask 261120
        %v374 = vsel %vm373, %v372, 0.0
        %375 = vadd.xlane.f32.xlu0 %v374
        %v376 = vpop.xlane.xlu0 %375
        %v377 = vrcp.pop 32.0
        %v378 = vmul.f32 %v376, %v377
        %v379 = vadd.f32 %v378, 1e-06
        %v380 = vrsqrt.pop %v379
        %v381 = vmul.f32 %v370, %v380
        %v383 = vlaneseq
        %v384 = vshrl.u32 %v383, 7
        %v385 = vsub.s32 0, %v384
        %v386 = vrot.slane %v371, %v385
        %v388 = vmul.f32 %v381, %v386
        %v389 = vld [vmem:[%s4] sm:$0xf]
        %v390 = vld [vmem:[%s4 + $0x4] sm:$0xf]
        %v391 = vld [vmem:[%s4 + $0x8] sm:$0xf]
        %v392 = vld [vmem:[%s4 + $0xc] sm:$0xf]
        %v393 = vld [vmem:[%s4 + $0x10] sm:$0xf]
        %v394 = vld [vmem:[%s4 + $0x14] sm:$0xf]
        %v395 = vld [vmem:[%s4 + $0x18] sm:$0xf]
        %v396 = vld [vmem:[%s4 + $0x1c] sm:$0xf]
        %v397 = vld [vmem:[%s4 + $0x20] sm:$0xf]
        %v398 = vld [vmem:[%s4 + $0x24] sm:$0xf]
        %v399 = vld [vmem:[%s4 + $0x28] sm:$0xf]
        %v400 = vld [vmem:[%s4 + $0x2c] sm:$0xf]
        %v401 = vld [vmem:[%s4 + $0x30] sm:$0xf]
        %v402 = vld [vmem:[%s4 + $0x34] sm:$0xf]
        %v403 = vld [vmem:[%s4 + $0x38] sm:$0xf]
        %v404 = vld [vmem:[%s4 + $0x3c] sm:$0xf]
        %v405 = vld [vmem:[%s4 + $0x40] sm:$0xf]
        %v406 = vld [vmem:[%s4 + $0x44] sm:$0xf]
        %v407 = vld [vmem:[%s4 + $0x48] sm:$0xf]
        %v408 = vld [vmem:[%s4 + $0x4c] sm:$0xf]
        %v409 = vld [vmem:[%s4 + $0x50] sm:$0xf]
        %v410 = vld [vmem:[%s4 + $0x54] sm:$0xf]
        %v411 = vld [vmem:[%s4 + $0x58] sm:$0xf]
        %v412 = vld [vmem:[%s4 + $0x5c] sm:$0xf]
        %v413 = vpack.c.bf16 %v388, %v388
        %v438 = vunpack.c.l.b16 %v389
        %v439 = vunpack.c.l.b16 %v390
        %v440 = vunpack.c.l.b16 %v391
        %v441 = vunpack.c.l.b16 %v392
        %v442 = vunpack.c.l.b16 %v393
        %v443 = vunpack.c.l.b16 %v394
        %v444 = vunpack.c.l.b16 %v395
        %v445 = vunpack.c.l.b16 %v396
        %v446 = vunpack.c.l.b16 %v397
        %v447 = vunpack.c.l.b16 %v398
        %v448 = vunpack.c.l.b16 %v399
        %v449 = vunpack.c.l.b16 %v400
        %v450 = vunpack.c.l.b16 %v401
        %v451 = vunpack.c.l.b16 %v402
        %v452 = vunpack.c.l.b16 %v403
        %v453 = vunpack.c.l.b16 %v404
        %v454 = vunpack.c.l.b16 %v405
        %v455 = vunpack.c.l.b16 %v406
        %v456 = vunpack.c.l.b16 %v407
        %v457 = vunpack.c.l.b16 %v408
        %v458 = vunpack.c.l.b16 %v409
        %v459 = vunpack.c.l.b16 %v410
        %v460 = vunpack.c.l.b16 %v411
        %v461 = vunpack.c.l.b16 %v412
        %v462 = vpack.c.b16 %v439, %v438
        %v463 = vpack.c.b16 %v441, %v440
        %v464 = vpack.c.b16 %v443, %v442
        %v465 = vpack.c.b16 %v445, %v444
        %v466 = vpack.c.b16 %v447, %v446
        %v467 = vpack.c.b16 %v449, %v448
        %v468 = vpack.c.b16 %v451, %v450
        %v469 = vpack.c.b16 %v453, %v452
        %v470 = vpack.c.b16 %v455, %v454
        %v471 = vpack.c.b16 %v457, %v456
        %v472 = vpack.c.b16 %v459, %v458
        %v473 = vpack.c.b16 %v461, %v460
        %v475 = vsel %vm373, %v462, 0
        %v478 = vsel %vm373, %v463, 0
        %v481 = vsel %vm373, %v464, 0
        %v484 = vsel %vm373, %v465, 0
        %v487 = vsel %vm373, %v466, 0
        %v490 = vsel %vm373, %v467, 0
        %v493 = vsel %vm373, %v468, 0
        %v496 = vsel %vm373, %v469, 0
        %v499 = vsel %vm373, %v470, 0
        %v502 = vsel %vm373, %v471, 0
        %v505 = vsel %vm373, %v472, 0
        %v508 = vsel %vm373, %v473, 0
        %v511 = vsel %vm373, %v413, 0
        %513 = vmatprep.subr.bf16.mxu0 0
        %514 = vmatpush1.bf16.xpose.msra.mxu0 0
        %515 = vmatprep.subr.bf16.mxu0 0
        %516 = vmatpush1.bf16.xpose.msra.mxu0 0
        %517 = vmatprep.subr.bf16.mxu0 0
        %518 = vmatpush1.bf16.xpose.msra.mxu0 0
        %519 = vmatprep.subr.bf16.mxu0 0
        %520 = vmatpush1.bf16.xpose.msra.mxu0 0
        %521 = vmatprep.subr.bf16.mxu0 0
        %522 = vmatpush1.bf16.xpose.msra.mxu0 0
        %523 = vmatprep.subr.bf16.mxu0 0
        %524 = vmatpush1.bf16.xpose.msra.mxu0 0
        %525 = vmatprep.subr.bf16.mxu0 0
        %526 = vmatpush1.bf16.xpose.msra.mxu0 0
        %527 = vmatprep.subr.bf16.mxu0 0
        %528 = vmatpush1.bf16.xpose.msra.mxu0 %v511
        %529 = vmatprep.subr.bf16.mxu0 0
        %530 = vmatpush2.bf16.xpose.msra.mxu0 0
        %531 = vmatprep.subr.bf16.mxu0 0
        %532 = vmatpush2.bf16.xpose.msra.mxu0 0
        %533 = vmatprep.subr.bf16.mxu0 0
        %534 = vmatpush2.bf16.xpose.msra.mxu0 0
        %535 = vmatprep.subr.bf16.mxu0 0
        %536 = vmatpush2.bf16.xpose.msra.mxu0 0
        %537 = vmatprep.subr.bf16.mxu0 0
        %538 = vmatpush2.bf16.xpose.msra.mxu0 0
        %539 = vmatprep.subr.bf16.mxu0 0
        %540 = vmatpush2.bf16.xpose.msra.mxu0 0
        %541 = vmatprep.subr.bf16.mxu0 0
        %542 = vmatpush2.bf16.xpose.msra.mxu0 0
        %543 = vmatprep.subr.bf16.mxu0 0
        %544 = vmatpush2.bf16.xpose.msra.mxu0 0
        %545 = vmatprep.mubr.bf16.mxu0 0
        %546 = vmatmul.mubr.bf16.gmra.mxu0 %v475
        %v547 = vpop.f32.mrf.mxu0
        %v548 = vadd.f32 0.0, %v547
        %v549 = vpop.f32.mrf.mxu0
        %v550 = vpop.f32.mrf.mxu0
        %v551 = vadd.f32 0.0, %v550
        %v552 = vpop.f32.mrf.mxu0
        %553 = vmatprep.mubr.bf16.mxu0 0
        %554 = vmatmul.mubr.bf16.gmra.mxu0 %v478
        %v555 = vpop.f32.mrf.mxu0
        %v556 = vadd.f32 0.0, %v555
        %v557 = vpop.f32.mrf.mxu0
        %v558 = vpop.f32.mrf.mxu0
        %v559 = vadd.f32 0.0, %v558
        %v560 = vpop.f32.mrf.mxu0
        %561 = vmatprep.mubr.bf16.mxu0 0
        %562 = vmatmul.mubr.bf16.gmra.mxu0 %v481
        %v563 = vpop.f32.mrf.mxu0
        %v564 = vadd.f32 0.0, %v563
        %v565 = vpop.f32.mrf.mxu0
        %v566 = vpop.f32.mrf.mxu0
        %v567 = vadd.f32 0.0, %v566
        %v568 = vpop.f32.mrf.mxu0
        %569 = vmatprep.mubr.bf16.mxu0 0
        %570 = vmatmul.mubr.bf16.gmra.mxu0 %v484
        %v571 = vpop.f32.mrf.mxu0
        %v572 = vadd.f32 0.0, %v571
        %v573 = vpop.f32.mrf.mxu0
        %v574 = vpop.f32.mrf.mxu0
        %v575 = vadd.f32 0.0, %v574
        %v576 = vpop.f32.mrf.mxu0
        %577 = vmatprep.mubr.bf16.mxu0 0
        %578 = vmatmul.mubr.bf16.gmra.mxu0 %v487
        %v579 = vpop.f32.mrf.mxu0
        %v580 = vadd.f32 0.0, %v579
        %v581 = vpop.f32.mrf.mxu0
        %v582 = vpop.f32.mrf.mxu0
        %v583 = vadd.f32 0.0, %v582
        %v584 = vpop.f32.mrf.mxu0
        %585 = vmatprep.mubr.bf16.mxu0 0
        %586 = vmatmul.mubr.bf16.gmra.mxu0 %v490
        %v587 = vpop.f32.mrf.mxu0
        %v588 = vadd.f32 0.0, %v587
        %v589 = vpop.f32.mrf.mxu0
        %v590 = vpop.f32.mrf.mxu0
        %v591 = vadd.f32 0.0, %v590
        %v592 = vpop.f32.mrf.mxu0
        %593 = vmatprep.mubr.bf16.mxu0 0
        %594 = vmatmul.mubr.bf16.gmra.mxu0 %v493
        %v595 = vpop.f32.mrf.mxu0
        %v596 = vadd.f32 0.0, %v595
        %v597 = vpop.f32.mrf.mxu0
        %v598 = vpop.f32.mrf.mxu0
        %v599 = vadd.f32 0.0, %v598
        %v600 = vpop.f32.mrf.mxu0
        %601 = vmatprep.mubr.bf16.mxu0 0
        %602 = vmatmul.mubr.bf16.gmra.mxu0 %v496
        %v603 = vpop.f32.mrf.mxu0
        %v604 = vadd.f32 0.0, %v603
        %v605 = vpop.f32.mrf.mxu0
        %v606 = vpop.f32.mrf.mxu0
        %v607 = vadd.f32 0.0, %v606
        %v608 = vpop.f32.mrf.mxu0
        %609 = vmatprep.mubr.bf16.mxu0 0
        %610 = vmatmul.mubr.bf16.gmra.mxu0 %v499
        %v611 = vpop.f32.mrf.mxu0
        %v612 = vadd.f32 0.0, %v611
        %v613 = vpop.f32.mrf.mxu0
        %v614 = vpop.f32.mrf.mxu0
        %v615 = vadd.f32 0.0, %v614
        %v616 = vpop.f32.mrf.mxu0
        %617 = vmatprep.mubr.bf16.mxu0 0
        %618 = vmatmul.mubr.bf16.gmra.mxu0 %v502
        %v619 = vpop.f32.mrf.mxu0
        %v620 = vadd.f32 0.0, %v619
        %v621 = vpop.f32.mrf.mxu0
        %v622 = vpop.f32.mrf.mxu0
        %v623 = vadd.f32 0.0, %v622
        %v624 = vpop.f32.mrf.mxu0
        %625 = vmatprep.mubr.bf16.mxu0 0
        %626 = vmatmul.mubr.bf16.gmra.mxu0 %v505
        %v627 = vpop.f32.mrf.mxu0
        %v628 = vadd.f32 0.0, %v627
        %v629 = vpop.f32.mrf.mxu0
        %v630 = vpop.f32.mrf.mxu0
        %v631 = vadd.f32 0.0, %v630
        %v632 = vpop.f32.mrf.mxu0
        %633 = vmatprep.mubr.bf16.mxu0 0
        %634 = vmatmul.mubr.bf16.gmra.mxu0 %v508
        %v635 = vpop.f32.mrf.mxu0
        %v636 = vadd.f32 0.0, %v635
        %v637 = vpop.f32.mrf.mxu0
        %v638 = vpop.f32.mrf.mxu0
        %v639 = vadd.f32 0.0, %v638
        %v640 = vpop.f32.mrf.mxu0
        %641 = vdwg.mxu0
        %v642 = vpack.c.bf16 %v551, %v548
        %v643 = vpack.c.bf16 %v559, %v556
        %v644 = vpack.c.bf16 %v567, %v564
        %v645 = vpack.c.bf16 %v575, %v572
        %v646 = vpack.c.bf16 %v583, %v580
        %v647 = vpack.c.bf16 %v591, %v588
        %v648 = vpack.c.bf16 %v599, %v596
        %v649 = vpack.c.bf16 %v607, %v604
        %v650 = vpack.c.bf16 %v615, %v612
        %v651 = vpack.c.bf16 %v623, %v620
        %v652 = vpack.c.bf16 %v631, %v628
        %v653 = vpack.c.bf16 %v639, %v636
        %v666 = vunpack.c.l.b16 %v642
        %v667 = vunpack.c.h.b16 %v642
        %v668 = vunpack.c.l.b16 %v643
        %v669 = vunpack.c.h.b16 %v643
        %v670 = vunpack.c.l.b16 %v644
        %v671 = vunpack.c.h.b16 %v644
        %v672 = vunpack.c.l.b16 %v645
        %v673 = vunpack.c.h.b16 %v645
        %v674 = vunpack.c.l.b16 %v646
        %v675 = vunpack.c.h.b16 %v646
        %v676 = vunpack.c.l.b16 %v647
        %v677 = vunpack.c.h.b16 %v647
        %v678 = vunpack.c.l.b16 %v648
        %v679 = vunpack.c.h.b16 %v648
        %v680 = vunpack.c.l.b16 %v649
        %v681 = vunpack.c.h.b16 %v649
        %v682 = vunpack.c.l.b16 %v650
        %v683 = vunpack.c.h.b16 %v650
        %v684 = vunpack.c.l.b16 %v651
        %v685 = vunpack.c.h.b16 %v651
        %v686 = vunpack.c.l.b16 %v652
        %v687 = vunpack.c.h.b16 %v652
        %v688 = vunpack.c.l.b16 %v653
        %v689 = vunpack.c.h.b16 %v653
        %v690 = vpack.c.b16 %v666, %v666
        %v691 = vpack.c.b16 %v667, %v667
        %v692 = vpack.c.b16 %v668, %v668
        %v693 = vpack.c.b16 %v669, %v669
        %v694 = vpack.c.b16 %v670, %v670
        %v695 = vpack.c.b16 %v671, %v671
        %v696 = vpack.c.b16 %v672, %v672
        %v697 = vpack.c.b16 %v673, %v673
        %v698 = vpack.c.b16 %v674, %v674
        %v699 = vpack.c.b16 %v675, %v675
        %v700 = vpack.c.b16 %v676, %v676
        %v701 = vpack.c.b16 %v677, %v677
        %v702 = vpack.c.b16 %v678, %v678
        %v703 = vpack.c.b16 %v679, %v679
        %v704 = vpack.c.b16 %v680, %v680
        %v705 = vpack.c.b16 %v681, %v681
        %v706 = vpack.c.b16 %v682, %v682
        %v707 = vpack.c.b16 %v683, %v683
        %v708 = vpack.c.b16 %v684, %v684
        %v709 = vpack.c.b16 %v685, %v685
        %v710 = vpack.c.b16 %v686, %v686
        %v711 = vpack.c.b16 %v687, %v687
        %v712 = vpack.c.b16 %v688, %v688
        %v713 = vpack.c.b16 %v689, %v689
        %vm738 = vcmask 60416
        %739 = vst.msk [vmem:[#allocation2] sm:$0xf] %vm738, %v690
        %740 = vst.msk [vmem:[#allocation2 + $0x4] sm:$0xf] %vm738, %v691
        %741 = vst.msk [vmem:[#allocation2 + $0x8] sm:$0xf] %vm738, %v692
        %742 = vst.msk [vmem:[#allocation2 + $0xc] sm:$0xf] %vm738, %v693
        %743 = vst.msk [vmem:[#allocation2 + $0x10] sm:$0xf] %vm738, %v694
        %744 = vst.msk [vmem:[#allocation2 + $0x14] sm:$0xf] %vm738, %v695
        %745 = vst.msk [vmem:[#allocation2 + $0x18] sm:$0xf] %vm738, %v696
        %746 = vst.msk [vmem:[#allocation2 + $0x1c] sm:$0xf] %vm738, %v697
        %747 = vst.msk [vmem:[#allocation2 + $0x20] sm:$0xf] %vm738, %v698
        %748 = vst.msk [vmem:[#allocation2 + $0x24] sm:$0xf] %vm738, %v699
        %749 = vst.msk [vmem:[#allocation2 + $0x28] sm:$0xf] %vm738, %v700
        %750 = vst.msk [vmem:[#allocation2 + $0x2c] sm:$0xf] %vm738, %v701
        %751 = vst.msk [vmem:[#allocation2 + $0x30] sm:$0xf] %vm738, %v702
        %752 = vst.msk [vmem:[#allocation2 + $0x34] sm:$0xf] %vm738, %v703
        %753 = vst.msk [vmem:[#allocation2 + $0x38] sm:$0xf] %vm738, %v704
        %754 = vst.msk [vmem:[#allocation2 + $0x3c] sm:$0xf] %vm738, %v705
        %755 = vst.msk [vmem:[#allocation2 + $0x40] sm:$0xf] %vm738, %v706
        %756 = vst.msk [vmem:[#allocation2 + $0x44] sm:$0xf] %vm738, %v707
        %757 = vst.msk [vmem:[#allocation2 + $0x48] sm:$0xf] %vm738, %v708
        %758 = vst.msk [vmem:[#allocation2 + $0x4c] sm:$0xf] %vm738, %v709
        %759 = vst.msk [vmem:[#allocation2 + $0x50] sm:$0xf] %vm738, %v710
        %760 = vst.msk [vmem:[#allocation2 + $0x54] sm:$0xf] %vm738, %v711
        %761 = vst.msk [vmem:[#allocation2 + $0x58] sm:$0xf] %vm738, %v712
        %762 = vst.msk [vmem:[#allocation2 + $0x5c] sm:$0xf] %vm738, %v713
        loop: start=0, step=1, limit=4
        $region45: #{tpu_custom_call.1} parent=43 // loop_pre_header
          _
        $region46: #{tpu_custom_call.1} parent=43 // loop_header
          %s764 = sphi 0, %s768
          %p765 = scmp.ge.s32.totalorder %s764, 4
        $region47: #{tpu_custom_call.1} parent=43 // loop_header_branch
          %767 = sbr.rel (%p765) target = $region51
        $region48: #{tpu_custom_call.1} parent=43 // loop_body
          %s769 = smul.u32 %s764, 16
          %s770 = sadd.s32 %s769, 64
          %s771 = sadd.s32 %s769, 128
          %s772 = sshra.s32 %s769, 3
          %s773 = sand.u32 %s769, 7
          %s774 = smul.addr %s772, 4
          %s775 = scalar_lea.vmem [#allocation2], %s774
          %v776 = vld [vmem:[%s775] sm:$0xf]
          %v777 = vld [vmem:[%s775 + $0x4] sm:$0xf]
          %s778 = sshra.s32 %s770, 3
          %s779 = sand.u32 %s770, 7
          %s780 = smul.addr %s778, 4
          %s781 = scalar_lea.vmem [#allocation2], %s780
          %v782 = vld [vmem:[%s781] sm:$0xf]
          %v783 = vld [vmem:[%s781 + $0x4] sm:$0xf]
          %s784 = sshra.s32 %s771, 3
          %s785 = sand.u32 %s771, 7
          %s786 = smul.addr %s784, 4
          %s787 = scalar_lea.vmem [#allocation2], %s786
          %v788 = vld [vmem:[%s787] sm:$0xf]
          %v789 = vld [vmem:[%s787 + $0x4] sm:$0xf]
          %v792 = vunpack.c.l.b16 %v776
          %v793 = vunpack.c.l.b16 %v777
          %v794 = vpack.c.b16 %v793, %v792
          %796 = vxpose.xlu0.c.b16.start [1/8] %v794, 128
          %797 = vxpose.xlu0.c.b16.cont [2/8] 0, 128
          %798 = vxpose.xlu0.c.b16.cont [3/8] 0, 128
          %799 = vxpose.xlu0.c.b16.cont [4/8] 0, 128
          %800 = vxpose.xlu0.c.b16.cont [5/8] 0, 128
          %801 = vxpose.xlu0.c.b16.cont [6/8] 0, 128
          %802 = vxpose.xlu0.c.b16.cont [7/8] 0, 128
          %803 = vxpose.xlu0.c.b16.end [8/8] 0, 128
          %v804 = vpop.trf.xlu0
          %v805 = vpop.trf.xlu0
          %v806 = vpop.trf.xlu0
          %v807 = vpop.trf.xlu0
          %v808 = vpop.trf.xlu0
          %v809 = vpop.trf.xlu0
          %v810 = vpop.trf.xlu0
          %v811 = vpop.trf.xlu0
          %v814 = vunpack.c.l.b16 %v782
          %v815 = vunpack.c.l.b16 %v783
          %v816 = vpack.c.b16 %v815, %v814
          %vm818 = vcmask 130048
          %v820 = vsel %vm818, %v804, 0
          %822 = vmatprep.subr.bf16.mxu0 0
          %823 = vmatpush1.bf16.msra.mxu0 0
          %824 = vmatprep.subr.bf16.mxu0 0
          %825 = vmatpush1.bf16.msra.mxu0 0
          %826 = vmatprep.subr.bf16.mxu0 0
          %827 = vmatpush1.bf16.msra.mxu0 0
          %828 = vmatprep.subr.bf16.mxu0 0
          %829 = vmatpush1.bf16.msra.mxu0 0
          %830 = vmatprep.subr.bf16.mxu0 0
          %831 = vmatpush1.bf16.msra.mxu0 0
          %832 = vmatprep.subr.bf16.mxu0 0
          %833 = vmatpush1.bf16.msra.mxu0 0
          %834 = vmatprep.subr.bf16.mxu0 0
          %835 = vmatpush1.bf16.msra.mxu0 0
          %836 = vmatprep.subr.bf16.mxu0 0
          %837 = vmatpush1.bf16.msra.mxu0 %v816
          %838 = vmatprep.subr.bf16.mxu0 0
          %839 = vmatpush2.bf16.msra.mxu0 0
          %840 = vmatprep.subr.bf16.mxu0 0
          %841 = vmatpush2.bf16.msra.mxu0 0
          %842 = vmatprep.subr.bf16.mxu0 0
          %843 = vmatpush2.bf16.msra.mxu0 0
          %844 = vmatprep.subr.bf16.mxu0 0
          %845 = vmatpush2.bf16.msra.mxu0 0
          %846 = vmatprep.subr.bf16.mxu0 0
          %847 = vmatpush2.bf16.msra.mxu0 0
          %848 = vmatprep.subr.bf16.mxu0 0
          %849 = vmatpush2.bf16.msra.mxu0 0
          %850 = vmatprep.subr.bf16.mxu0 0
          %851 = vmatpush2.bf16.msra.mxu0 0
          %852 = vmatprep.subr.bf16.mxu0 0
          %853 = vmatpush2.bf16.msra.mxu0 0
          %854 = vmatprep.mubr.bf16.mxu0 0
          %855 = vmatmul.mubr.bf16.gmra.mxu0 %v820
          %v856 = vpop.f32.mrf.mxu0
          %v857 = vadd.f32 0.0, %v856
          %v858 = vpop.f32.mrf.mxu0
          %v859 = vpop.f32.mrf.mxu0
          %v860 = vpop.f32.mrf.mxu0
          %861 = vdwg.mxu0
          %vm862 = vcmask 64512
          %v863 = vsel %vm862, %v857, -inf
          %864 = vmax.xlane.f32.xlu0 %v863
          %v865 = vpop.xlane.xlu0 %864
          %v866 = vsub.f32 %v857, %v865
          %v867 = vmul.f32 %v866, 1.442695
          %v868 = vpow.pop %v867
          %v869 = vsel %vm862, %v868, 0.0
          %870 = vadd.xlane.f32.xlu0 %v869
          %v871 = vpop.xlane.xlu0 %870
          %v872 = vrcp.pop %v871
          %v873 = vmul.f32 %v868, %v872
          %v874 = vpack.c.bf16 %v873, %v873
          %v877 = vunpack.c.l.b16 %v788
          %v878 = vunpack.c.l.b16 %v789
          %v879 = vpack.c.b16 %v878, %v877
          %v881 = vsel %vm862, %v879, 0
          %v884 = vsel %vm862, %v874, 0
          %886 = vmatprep.subr.bf16.mxu0 0
          %887 = vmatpush1.bf16.xpose.msra.mxu0 0
          %888 = vmatprep.subr.bf16.mxu0 0
          %889 = vmatpush1.bf16.xpose.msra.mxu0 0
          %890 = vmatprep.subr.bf16.mxu0 0
          %891 = vmatpush1.bf16.xpose.msra.mxu0 0
          %892 = vmatprep.subr.bf16.mxu0 0
          %893 = vmatpush1.bf16.xpose.msra.mxu0 0
          %894 = vmatprep.subr.bf16.mxu0 0
          %895 = vmatpush1.bf16.xpose.msra.mxu0 0
          %896 = vmatprep.subr.bf16.mxu0 0
          %897 = vmatpush1.bf16.xpose.msra.mxu0 0
          %898 = vmatprep.subr.bf16.mxu0 0
          %899 = vmatpush1.bf16.xpose.msra.mxu0 0
          %900 = vmatprep.subr.bf16.mxu0 0
          %901 = vmatpush1.bf16.xpose.msra.mxu0 %v884
          %902 = vmatprep.subr.bf16.mxu0 0
          %903 = vmatpush2.bf16.xpose.msra.mxu0 0
          %904 = vmatprep.subr.bf16.mxu0 0
          %905 = vmatpush2.bf16.xpose.msra.mxu0 0
          %906 = vmatprep.subr.bf16.mxu0 0
          %907 = vmatpush2.bf16.xpose.msra.mxu0 0
          %908 = vmatprep.subr.bf16.mxu0 0
          %909 = vmatpush2.bf16.xpose.msra.mxu0 0
          %910 = vmatprep.subr.bf16.mxu0 0
          %911 = vmatpush2.bf16.xpose.msra.mxu0 0
          %912 = vmatprep.subr.bf16.mxu0 0
          %913 = vmatpush2.bf16.xpose.msra.mxu0 0
          %914 = vmatprep.subr.bf16.mxu0 0
          %915 = vmatpush2.bf16.xpose.msra.mxu0 0
          %916 = vmatprep.subr.bf16.mxu0 0
          %917 = vmatpush2.bf16.xpose.msra.mxu0 0
          %918 = vmatprep.mubr.bf16.mxu0 0
          %919 = vmatmul.mubr.bf16.gmra.mxu0 %v881
          %v920 = vpop.f32.mrf.mxu0
          %v921 = vadd.f32 0.0, %v920
          %v922 = vpop.f32.mrf.mxu0
          %v923 = vpop.f32.mrf.mxu0
          %v924 = vadd.f32 0.0, %v923
          %v925 = vpop.f32.mrf.mxu0
          %926 = vdwg.mxu0
          %v927 = vpack.c.bf16 %v924, %v921
          %v929 = vunpack.c.l.b16 %v927
          %v930 = vunpack.c.h.b16 %v927
          %v931 = vpack.c.b16 %v929, %v929
          %v932 = vpack.c.b16 %v930, %v930
          %s935 = smul.addr %s772, 4
          %s936 = scalar_lea.vmem [#allocation3], %s935
          %937 = vst.msk [vmem:[%s936] sm:$0xf] %vm738, %v931
          %938 = vst.msk [vmem:[%s936 + $0x4] sm:$0xf] %vm738, %v932
        $region49: #{tpu_custom_call.1} parent=43 // loop_footer
          %s768 = sadd.s32 1, %s764
        $region50: #{tpu_custom_call.1} parent=43 // loop_footer_branch
          %763 = sbr.rel target = $region46
        $region51: #{tpu_custom_call.1} parent=43 // loop_exit
          _
        %v939 = vld [vmem:[#allocation3] sm:$0xf]
        %v940 = vld [vmem:[#allocation3 + $0x4] sm:$0xf]
        %v941 = vld [vmem:[#allocation3 + $0x8] sm:$0xf]
        %v942 = vld [vmem:[#allocation3 + $0xc] sm:$0xf]
        %v943 = vld [vmem:[#allocation3 + $0x10] sm:$0xf]
        %v944 = vld [vmem:[#allocation3 + $0x14] sm:$0xf]
        %v945 = vld [vmem:[#allocation3 + $0x18] sm:$0xf]
        %v946 = vld [vmem:[#allocation3 + $0x1c] sm:$0xf]
        %v947 = vld [vmem:[%s5] sm:$0xf]
        %v948 = vld [vmem:[%s5 + $0x4] sm:$0xf]
        %v949 = vld [vmem:[%s5 + $0x8] sm:$0xf]
        %v950 = vld [vmem:[%s5 + $0xc] sm:$0xf]
        %v951 = vld [vmem:[%s5 + $0x10] sm:$0xf]
        %v952 = vld [vmem:[%s5 + $0x14] sm:$0xf]
        %v953 = vld [vmem:[%s5 + $0x18] sm:$0xf]
        %v954 = vld [vmem:[%s5 + $0x1c] sm:$0xf]
        %v963 = vunpack.c.l.b16 %v939
        %v964 = vunpack.c.l.b16 %v940
        %v965 = vunpack.c.l.b16 %v941
        %v966 = vunpack.c.l.b16 %v942
        %v967 = vunpack.c.l.b16 %v943
        %v968 = vunpack.c.l.b16 %v944
        %v969 = vunpack.c.l.b16 %v945
        %v970 = vunpack.c.l.b16 %v946
        %v971 = vpack.c.b16 %v964, %v963
        %v972 = vpack.c.b16 %v966, %v965
        %v973 = vpack.c.b16 %v968, %v967
        %v974 = vpack.c.b16 %v970, %v969
        %979 = vxpose.xlu0.c.b16.start [1/8] %v971, 128
        %980 = vxpose.xlu0.c.b16.cont [2/8] %v972, 128
        %981 = vxpose.xlu0.c.b16.cont [3/8] %v973, 128
        %982 = vxpose.xlu0.c.b16.cont [4/8] %v974, 128
        %983 = vxpose.xlu0.c.b16.cont [5/8] 0, 128
        %984 = vxpose.xlu0.c.b16.cont [6/8] 0, 128
        %985 = vxpose.xlu0.c.b16.cont [7/8] 0, 128
        %986 = vxpose.xlu0.c.b16.end [8/8] 0, 128
        %v987 = vpop.trf.xlu0
        %v988 = vpop.trf.xlu0
        %v989 = vpop.trf.xlu0
        %v990 = vpop.trf.xlu0
        %v991 = vpop.trf.xlu0
        %v992 = vpop.trf.xlu0
        %v993 = vpop.trf.xlu0
        %v994 = vpop.trf.xlu0
        %v1003 = vunpack.c.l.b16 %v947
        %v1004 = vunpack.c.l.b16 %v948
        %v1005 = vunpack.c.l.b16 %v949
        %v1006 = vunpack.c.l.b16 %v950
        %v1007 = vunpack.c.l.b16 %v951
        %v1008 = vunpack.c.l.b16 %v952
        %v1009 = vunpack.c.l.b16 %v953
        %v1010 = vunpack.c.l.b16 %v954
        %v1011 = vpack.c.b16 %v1004, %v1003
        %v1012 = vpack.c.b16 %v1006, %v1005
        %v1013 = vpack.c.b16 %v1008, %v1007
        %v1014 = vpack.c.b16 %v1010, %v1009
        %vm1019 = vcmask 523264
        %v1021 = vsel %vm1019, %v987, 0
        %1023 = vmatprep.subr.bf16.mxu0 0
        %1024 = vmatpush1.bf16.msra.mxu0 0
        %1025 = vmatprep.subr.bf16.mxu0 0
        %1026 = vmatpush1.bf16.msra.mxu0 0
        %1027 = vmatprep.subr.bf16.mxu0 0
        %1028 = vmatpush1.bf16.msra.mxu0 0
        %1029 = vmatprep.subr.bf16.mxu0 0
        %1030 = vmatpush1.bf16.msra.mxu0 0
        %1031 = vmatprep.subr.bf16.mxu0 0
        %1032 = vmatpush1.bf16.msra.mxu0 %v1014
        %1033 = vmatprep.subr.bf16.mxu0 0
        %1034 = vmatpush1.bf16.msra.mxu0 %v1013
        %1035 = vmatprep.subr.bf16.mxu0 0
        %1036 = vmatpush1.bf16.msra.mxu0 %v1012
        %1037 = vmatprep.subr.bf16.mxu0 0
        %1038 = vmatpush1.bf16.msra.mxu0 %v1011
        %1039 = vmatprep.subr.bf16.mxu0 0
        %1040 = vmatpush2.bf16.msra.mxu0 0
        %1041 = vmatprep.subr.bf16.mxu0 0
        %1042 = vmatpush2.bf16.msra.mxu0 0
        %1043 = vmatprep.subr.bf16.mxu0 0
        %1044 = vmatpush2.bf16.msra.mxu0 0
        %1045 = vmatprep.subr.bf16.mxu0 0
        %1046 = vmatpush2.bf16.msra.mxu0 0
        %1047 = vmatprep.subr.bf16.mxu0 0
        %1048 = vmatpush2.bf16.msra.mxu0 0
        %1049 = vmatprep.subr.bf16.mxu0 0
        %1050 = vmatpush2.bf16.msra.mxu0 0
        %1051 = vmatprep.subr.bf16.mxu0 0
        %1052 = vmatpush2.bf16.msra.mxu0 0
        %1053 = vmatprep.subr.bf16.mxu0 0
        %1054 = vmatpush2.bf16.msra.mxu0 0
        %1055 = vmatprep.mubr.bf16.mxu0 0
        %1056 = vmatmul.mubr.bf16.gmra.mxu0 %v1021
        %v1057 = vpop.f32.mrf.mxu0
        %v1058 = vadd.f32 %v370, %v1057
        %v1059 = vpop.f32.mrf.mxu0
        %v1060 = vpop.f32.mrf.mxu0
        %v1061 = vpop.f32.mrf.mxu0
        %1062 = vdwg.mxu0
        %v1063 = vpack.c.bf16 %v1058, %v1058
        %1064 = vst.msk [vmem:[%s330] sm:$0xf] %vm361, %v1063
        %s1065 = sand.u32 %s175, 1
        %s1066 = scalar_lea.sflag [#allocation5], %s1065
        %s1067 = sand.u32 %s175, 1
        %s1068 = smul.addr %s1067, 4
        %s1069 = scalar_lea.vmem [#allocation4], %s1068
        %s1070 = sand.u32 %s26, 1
        %s1071 = scalar_lea.sflag [#allocation7], %s1070
        %s1072 = sand.u32 %s201, 1
        %s1073 = smul.addr %s1072, 8
        %s1074 = scalar_lea.vmem [#allocation6], %s1073
        %s1075 = sand.u32 %s26, 1
        %s1076 = scalar_lea.sflag [#allocation7], %s1075
        %s1077 = sand.u32 %s227, 1
        %s1078 = smul.addr %s1077, 8
        %s1079 = scalar_lea.vmem [#allocation8], %s1078
        // Predicated region
        $region52: #{tpu_custom_call.1} parent=43 // pred_check
          %p1080 = pneg %p185
        $region53: #{tpu_custom_call.1} parent=43 // pred_check_branch
          %1082 = sbr.rel (%p1080) target = $region55
        $region54: #{tpu_custom_call.1} parent=43 // pred_region
          %s1084 = ssub.s32 64, 64
          %1085 = vsyncadd %s1066, %s1084
          %s1086 = smul.addr %s26, 64
          %s1087 = scalar_lea.hbm %s6, %s1086
          %s1089 = sshll.u32 %s1069, 4
          %s1090 = int_to_ptr.vmem [resolvable:$true] %s1089
          %1092 = dma.vmem_to_hbm [thread:$0]  %s1090, 64, %s1087, %s1066
        $region55: #{tpu_custom_call.1} parent=43 // pred_fallthru
          _
        // Predicated region
        $region56: #{tpu_custom_call.1} parent=43 // pred_check
          %p1093 = pneg %p211
        $region57: #{tpu_custom_call.1} parent=43 // pred_check_branch
          %1095 = sbr.rel (%p1093) target = $region59
        $region58: #{tpu_custom_call.1} parent=43 // pred_region
          %s1097 = ssub.s32 128, 128
          %1098 = vsyncadd %s1071, %s1097
          %s1099 = smul.addr %s26, 2
          %s1100 = smul.addr %s1099, 64
          %s1101 = scalar_lea.hbm %s7, %s1100
          %s1102 = sshll.u32 %s1074, 4
          %s1103 = int_to_ptr.vmem [resolvable:$true] %s1102
          %1108 = dma.vmem_to_hbm [thread:$0]  %s1103, 128, %s1101, %s1071, 64, 64, 4
        $region59: #{tpu_custom_call.1} parent=43 // pred_fallthru
          _
        // Predicated region
        $region60: #{tpu_custom_call.1} parent=43 // pred_check
          %p1109 = pneg %p237
        $region61: #{tpu_custom_call.1} parent=43 // pred_check_branch
          %1111 = sbr.rel (%p1109) target = $region63
        $region62: #{tpu_custom_call.1} parent=43 // pred_region
          %s1113 = ssub.s32 128, 128
          %1114 = vsyncadd %s1076, %s1113
          %s1115 = smul.addr %s26, 2
          %s1116 = smul.addr %s1115, 64
          %s1117 = scalar_lea.hbm %s8, %s1116
          %s1118 = sshll.u32 %s1079, 4
          %s1119 = int_to_ptr.vmem [resolvable:$true] %s1118
          %1124 = dma.vmem_to_hbm [thread:$0]  %s1119, 128, %s1117, %s1076, 64, 64, 4
        $region63: #{tpu_custom_call.1} parent=43 // pred_fallthru
          _
      $region44: #{tpu_custom_call.1} parent=5 // pred_fallthru
        _
      %p1125 = scmp.le.s32.totalorder 2, %s21
      // Predicated region
      $region64: #{tpu_custom_call.1} parent=5 // pred_check
        %p1126 = pneg %p1125
      $region65: #{tpu_custom_call.1} parent=5 // pred_check_branch
        %1128 = sbr.rel (%p1126) target = $region67
      $region66: #{tpu_custom_call.1} parent=5 // pred_region
        %s1129 = ssub.s32 %s21, 2
        // Predicated region
        $region68: #{tpu_custom_call.1} parent=66 // pred_check
          %p1130 = pneg %p191
        $region69: #{tpu_custom_call.1} parent=66 // pred_check_branch
          %1132 = sbr.rel (%p1130) target = $region71
        $region70: #{tpu_custom_call.1} parent=66 // pred_region
          %s1133 = sand.u32 %s176, 1
          %s1134 = scalar_lea.sflag [#allocation5], %s1133
          %s1135 = sand.u32 %s176, 1
          %s1136 = smul.addr %s1135, 4
          %s1137 = scalar_lea.vmem [#allocation4], %s1136
          %1138 = dma.done %s1134, 64
        $region71: #{tpu_custom_call.1} parent=66 // pred_fallthru
          _
        // Predicated region
        $region72: #{tpu_custom_call.1} parent=66 // pred_check
          %p1139 = pneg %p217
        $region73: #{tpu_custom_call.1} parent=66 // pred_check_branch
          %1141 = sbr.rel (%p1139) target = $region75
        $region74: #{tpu_custom_call.1} parent=66 // pred_region
          %s1142 = sand.u32 %s27, 1
          %s1143 = scalar_lea.sflag [#allocation7], %s1142
          %s1144 = sand.u32 %s202, 1
          %s1145 = smul.addr %s1144, 8
          %s1146 = scalar_lea.vmem [#allocation6], %s1145
          %1147 = dma.done %s1143, 128
        $region75: #{tpu_custom_call.1} parent=66 // pred_fallthru
          _
        // Predicated region
        $region76: #{tpu_custom_call.1} parent=66 // pred_check
          %p1148 = pneg %p243
        $region77: #{tpu_custom_call.1} parent=66 // pred_check_branch
          %1150 = sbr.rel (%p1148) target = $region79
        $region78: #{tpu_custom_call.1} parent=66 // pred_region
          %s1151 = sand.u32 %s27, 1
          %s1152 = scalar_lea.sflag [#allocation7], %s1151
          %s1153 = sand.u32 %s228, 1
          %s1154 = smul.addr %s1153, 8
          %s1155 = scalar_lea.vmem [#allocation8], %s1154
          %1156 = dma.done %s1152, 128
        $region79: #{tpu_custom_call.1} parent=66 // pred_fallthru
          _
      $region67: #{tpu_custom_call.1} parent=5 // pred_fallthru
        _
    $region6: #{tpu_custom_call.1} parent=1 // loop_footer
      %s25 = sadd.s32 1, %s21
    $region7: #{tpu_custom_call.1} parent=1 // loop_footer_branch
      %20 = sbr.rel target = $region3
    $region8: #{tpu_custom_call.1} parent=1 // loop_exit
      _
    %1157 = vsyncpa [#allocation5], 1
    %s1158 = scalar_lea.sflag [#allocation5], 1
    %1159 = vsyncpa %s1158, 1
    %1160 = vsyncpa [#allocation7], 1
    %s1161 = scalar_lea.sflag [#allocation7], 1
    %1162 = vsyncpa %s1161, 1

</llo_original>
